<compile_context>
chip_gen: v7x
topology: tpu7x:2x2x1
jax: 0.10.0
libtpu: 0.0.40
codegen_flags: <defaults>
</compile_context>

<pallas_src>
import functools
import math

import jax
import jax.numpy as jnp
from jax.experimental import pallas as pl
from jax.experimental.pallas import tpu as pltpu


# ---------------------------------------------------------------------------
# Fused kernel: QKV projection + RoPE + softmax attention for one batch row
# ---------------------------------------------------------------------------
def fused_qkv_rope_attn_kernel(h_ref, w_ref, b_ref, cos_ref, sin_ref, o_ref,
                               *, num_heads, head_dim, sm_scale):
    half = head_dim // 2
    d_model = num_heads * head_dim

    # Fused QKV projection: bf16 operands, f32 accumulation on the MXU.
    x = h_ref[0].astype(jnp.bfloat16)                                # (S, D)
    qkv = jnp.dot(x, w_ref[...], preferred_element_type=jnp.float32)  # (S, 3D) f32
    qkv = qkv + b_ref[...]

    cos = cos_ref[...]                                               # (S, Dh/2) f32
    sin = sin_ref[...]

    def rope(z):
        # Q/K weight columns were de-interleaved per head in the wrapper, so the
        # interleaved complex rotation is a simple half-split rotation here.
        ze = z[:, :half]
        zo = z[:, half:]
        return jnp.concatenate([ze * cos - zo * sin, ze * sin + zo * cos], axis=-1)

    outs = []
    for h in range(num_heads):
        q = qkv[:, h * head_dim:(h + 1) * head_dim]
        k = qkv[:, d_model + h * head_dim: d_model + (h + 1) * head_dim]
        v = qkv[:, 2 * d_model + h * head_dim: 2 * d_model + (h + 1) * head_dim]

        qr = rope(q).astype(jnp.bfloat16)
        kr = rope(k).astype(jnp.bfloat16)

        # scores = Q K^T / sqrt(Dh): contract last dims of both (no transpose).
        scores = jax.lax.dot_general(
            qr, kr, (((1,), (1,)), ((), ())),
            preferred_element_type=jnp.float32) * sm_scale           # (S, S) f32

        # Softmax with deferred normalization: normalize the (S, Dh) context,
        # not the (S, S) probabilities.
        m = jnp.max(scores, axis=-1, keepdims=True)
        e = jnp.exp(scores - m)
        denom = jnp.sum(e, axis=-1, keepdims=True)
        # TODO(synk): attention-probs dropout / attention_mask / head_mask
        # omitted (eval-mode, unmasked self-attention path only).
        ctx = jnp.dot(e.astype(jnp.bfloat16), v.astype(jnp.bfloat16),
                      preferred_element_type=jnp.float32)            # (S, Dh) f32
        ctx = ctx / denom
        outs.append(ctx)

    # Single lane-dense store of all heads in the (B, S, H*Dh) layout.
    o_ref[0] = jnp.concatenate(outs, axis=-1).astype(o_ref.dtype)


# ---------------------------------------------------------------------------
# Wrapper
# ---------------------------------------------------------------------------
def _head_even_odd_perm(d_model, num_heads):
    dh = d_model // num_heads
    half = dh // 2
    base = jnp.arange(dh).reshape(half, 2).T.reshape(dh)   # [0,2,..,dh-2,1,3,..]
    return (jnp.arange(num_heads)[:, None] * dh + base[None, :]).reshape(d_model)


def bert_self_attention(hidden_states, wq, bq, wk, bk, wv, bv, num_heads):
    """BertSelfAttention forward (self-attention, absolute pos-emb, no mask).

    hidden_states: (B, S, D)
    wq/wk/wv:      (D, D)  -- pre-transposed vs. PyTorch Linear.weight (in, out)
    bq/bk/bv:      (D,)
    Returns the context layer of shape (B, S, D).
    """
    B, S, D = hidden_states.shape
    H = num_heads
    assert D % H == 0
    Dh = D // H
    assert Dh % 2 == 0
    half = Dh // 2
    dtype = hidden_states.dtype

    # Per-head (even | odd) column permutation of the Q/K projections so the
    # interleaved RoPE becomes a half-split rotation in-kernel. Scores are
    # invariant to a consistent permutation of the head dim, so V/output are
    # untouched. Weights stored bf16 (f32 accumulation happens in-kernel).
    perm = _head_even_odd_perm(D, H)
    w_qkv = jnp.concatenate([wq[:, perm], wk[:, perm], wv],
                            axis=1).astype(jnp.bfloat16)              # (D, 3D)
    b_qkv = jnp.concatenate([bq[perm], bk[perm], bv],
                            axis=0).reshape(1, 3 * D).astype(jnp.float32)

    # RoPE cos/sin tables (half-width: one entry per complex pair).
    inv_freq = 1.0 / (10000.0 ** (jnp.arange(half, dtype=jnp.float32) * 2.0 / Dh))
    theta = jnp.arange(S, dtype=jnp.float32)[:, None] * inv_freq[None, :]  # (S, half)
    cos_tab = jnp.cos(theta)
    sin_tab = jnp.sin(theta)

    kern = functools.partial(fused_qkv_rope_attn_kernel, num_heads=H,
                             head_dim=Dh, sm_scale=1.0 / math.sqrt(Dh))
    return pl.pallas_call(
        kern,
        out_shape=jax.ShapeDtypeStruct((B, S, D), dtype),
        grid=(B,),
        in_specs=[
            pl.BlockSpec((1, S, D), lambda b: (b, 0, 0)),     # hidden rows (pipelined)
            pl.BlockSpec((D, 3 * D), lambda b: (0, 0)),       # fused weights (resident)
            pl.BlockSpec((1, 3 * D), lambda b: (0, 0)),       # fused bias   (resident)
            pl.BlockSpec((S, half), lambda b: (0, 0)),        # cos          (resident)
            pl.BlockSpec((S, half), lambda b: (0, 0)),        # sin          (resident)
        ],
        out_specs=pl.BlockSpec((1, S, D), lambda b: (b, 0, 0)),
        compiler_params=pltpu.CompilerParams(
            dimension_semantics=("parallel",),
            vmem_limit_bytes=32 * 1024 * 1024),
    )(hidden_states, w_qkv, b_qkv, cos_tab, sin_tab)


if __name__ == "__main__":
    # Small shapes consistent with the module: hidden_size=256, 2 heads (Dh=128).
    B, S, H = 2, 16, 2
    D = 256
    Dh = D // H
    half = Dh // 2

    key = jax.random.PRNGKey(0)
    kh, kwq, kbq, kwk, kbk, kwv, kbv = jax.random.split(key, 7)
    hidden = jax.random.normal(kh, (B, S, D), dtype=jnp.float32)
    sc = 0.05
    wq = sc * jax.random.normal(kwq, (D, D), jnp.float32)
    bq = sc * jax.random.normal(kbq, (D,), jnp.float32)
    wk = sc * jax.random.normal(kwk, (D, D), jnp.float32)
    bk = sc * jax.random.normal(kbk, (D,), jnp.float32)
    wv = sc * jax.random.normal(kwv, (D, D), jnp.float32)
    bv = sc * jax.random.normal(kbv, (D,), jnp.float32)

    out = jax.block_until_ready(
        bert_self_attention(hidden, wq, bq, wk, bk, wv, bv, H))

    # ---- pure-JAX f32 reference mirroring the PyTorch forward -----------------
    def proj(w, b):
        y = hidden @ w + b
        return y.reshape(B, S, H, Dh).transpose(0, 2, 1, 3)     # (B, H, S, Dh)

    q_r = proj(wq, bq)
    k_r = proj(wk, bk)
    v_r = proj(wv, bv)

    inv_freq = 1.0 / (10000.0 ** (jnp.arange(half, dtype=jnp.float32) * 2.0 / Dh))
    theta = jnp.arange(S, dtype=jnp.float32)[:, None] * inv_freq[None, :]   # (S, half)
    cos_t, sin_t = jnp.cos(theta), jnp.sin(theta)

    def rope_interleaved(x):                                     # (B, H, S, Dh)
        xp = x.reshape(B, H, S, half, 2)
        xe, xo = xp[..., 0], xp[..., 1]
        oe = xe * cos_t - xo * sin_t
        oo = xe * sin_t + xo * cos_t
        return jnp.stack([oe, oo], axis=-1).reshape(B, H, S, Dh)

    qr = rope_interleaved(q_r)
    kr = rope_interleaved(k_r)
    scores = jnp.einsum("bhsd,bhtd->bhst", qr, kr) / math.sqrt(Dh)
    probs = jax.nn.softmax(scores, axis=-1)
    ctx_ref = jnp.einsum("bhst,bhtd->bhsd", probs, v_r)
    ctx_ref = ctx_ref.transpose(0, 2, 1, 3).reshape(B, S, D)

    assert out.shape == ctx_ref.shape
    err = float(jnp.max(jnp.abs(out - ctx_ref)))
    # Kernel uses bf16 MXU operands (f32 accumulation) -> small deviation vs f32.
    assert jnp.allclose(out, ctx_ref, atol=5e-2, rtol=5e-2), f"max abs err {err}"

    print("KERNEL_OK")
</pallas_src>

<mosaic_0001>
module attributes {stable_mosaic.version = 11 : i64} {
  func.func @fused_qkv_rope_attn_kernel(%arg0: i32, %arg1: memref<1x16x256xf32, #tpu.memory_space<vmem>>, %arg2: memref<256x768xbf16, #tpu.memory_space<vmem>>, %arg3: memref<1x768xf32, #tpu.memory_space<vmem>>, %arg4: memref<16x64xf32, #tpu.memory_space<vmem>>, %arg5: memref<16x64xf32, #tpu.memory_space<vmem>>, %arg6: memref<1x16x256xf32, #tpu.memory_space<vmem>>) attributes {dimension_semantics = [#tpu.dimension_semantics<parallel>], iteration_bounds = array<i64: 2>, scalar_prefetch = 0 : i64, scratch_operands = 0 : i64, tpu.core_type = #tpu.core_type<tc>, window_params = [{transform_indices = @transform_0, window_bounds = array<i64: 1, 16, 256>}, {pipeline_mode = #tpu.pipeline_mode<synchronous>, transform_indices = @transform_1, window_bounds = array<i64: 256, 768>}, {pipeline_mode = #tpu.pipeline_mode<synchronous>, transform_indices = @transform_2, window_bounds = array<i64: 1, 768>}, {pipeline_mode = #tpu.pipeline_mode<synchronous>, transform_indices = @transform_3, window_bounds = array<i64: 16, 64>}, {pipeline_mode = #tpu.pipeline_mode<synchronous>, transform_indices = @transform_4, window_bounds = array<i64: 16, 64>}, {transform_indices = @transform_5, window_bounds = array<i64: 1, 16, 256>}]} {
    %c0 = arith.constant 0 : index
    %c0_0 = arith.constant 0 : index
    %c0_1 = arith.constant 0 : index
    %0 = vector.load %arg1[%c0, %c0_0, %c0_1] : memref<1x16x256xf32, #tpu.memory_space<vmem>>, vector<1x16x256xf32>
    %1 = vector.shape_cast %0 : vector<1x16x256xf32> to vector<16x256xf32>
    %2 = arith.truncf %1 : vector<16x256xf32> to vector<16x256xbf16>
    %c0_2 = arith.constant 0 : index
    %c0_3 = arith.constant 0 : index
    %3 = vector.load %arg2[%c0_2, %c0_3] : memref<256x768xbf16, #tpu.memory_space<vmem>>, vector<256x768xbf16>
    %cst = arith.constant dense<0.000000e+00> : vector<16x768xf32>
    %4 = tpu.matmul %2, %3, %cst {dimension_numbers = #tpu.dot_dimension_numbers<[1], [0], [0], [1], [0, 0, 1, 1], [], []>} : vector<16x256xbf16>, vector<256x768xbf16>, vector<16x768xf32> -> vector<16x768xf32>
    %c0_4 = arith.constant 0 : index
    %c0_5 = arith.constant 0 : index
    %5 = vector.load %arg3[%c0_4, %c0_5] : memref<1x768xf32, #tpu.memory_space<vmem>>, vector<1x768xf32>
    %6 = vector.broadcast %5 : vector<1x768xf32> to vector<16x768xf32>
    %7 = arith.addf %4, %6 : vector<16x768xf32>
    %c0_6 = arith.constant 0 : index
    %c0_7 = arith.constant 0 : index
    %8 = vector.load %arg4[%c0_6, %c0_7] : memref<16x64xf32, #tpu.memory_space<vmem>>, vector<16x64xf32>
    %c0_8 = arith.constant 0 : index
    %c0_9 = arith.constant 0 : index
    %9 = vector.load %arg5[%c0_8, %c0_9] : memref<16x64xf32, #tpu.memory_space<vmem>>, vector<16x64xf32>
    %10 = vector.extract_strided_slice %7 {offsets = [0, 0], sizes = [16, 128], strides = [1, 1]} : vector<16x768xf32> to vector<16x128xf32>
    %11 = vector.extract_strided_slice %7 {offsets = [0, 256], sizes = [16, 128], strides = [1, 1]} : vector<16x768xf32> to vector<16x128xf32>
    %12 = vector.extract_strided_slice %7 {offsets = [0, 512], sizes = [16, 128], strides = [1, 1]} : vector<16x768xf32> to vector<16x128xf32>
    %13 = vector.extract_strided_slice %10 {offsets = [0, 0], sizes = [16, 64], strides = [1, 1]} : vector<16x128xf32> to vector<16x64xf32>
    %14 = vector.extract_strided_slice %10 {offsets = [0, 64], sizes = [16, 64], strides = [1, 1]} : vector<16x128xf32> to vector<16x64xf32>
    %15 = arith.mulf %13, %8 : vector<16x64xf32>
    %16 = arith.mulf %14, %9 : vector<16x64xf32>
    %17 = arith.subf %15, %16 : vector<16x64xf32>
    %18 = arith.mulf %13, %9 : vector<16x64xf32>
    %19 = arith.mulf %14, %8 : vector<16x64xf32>
    %20 = arith.addf %18, %19 : vector<16x64xf32>
    %21 = tpu.concatenate %17, %20 in 1 : vector<16x64xf32>, vector<16x64xf32> -> vector<16x128xf32>
    %22 = arith.truncf %21 : vector<16x128xf32> to vector<16x128xbf16>
    %23 = vector.extract_strided_slice %11 {offsets = [0, 0], sizes = [16, 64], strides = [1, 1]} : vector<16x128xf32> to vector<16x64xf32>
    %24 = vector.extract_strided_slice %11 {offsets = [0, 64], sizes = [16, 64], strides = [1, 1]} : vector<16x128xf32> to vector<16x64xf32>
    %25 = arith.mulf %23, %8 : vector<16x64xf32>
    %26 = arith.mulf %24, %9 : vector<16x64xf32>
    %27 = arith.subf %25, %26 : vector<16x64xf32>
    %28 = arith.mulf %23, %9 : vector<16x64xf32>
    %29 = arith.mulf %24, %8 : vector<16x64xf32>
    %30 = arith.addf %28, %29 : vector<16x64xf32>
    %31 = tpu.concatenate %27, %30 in 1 : vector<16x64xf32>, vector<16x64xf32> -> vector<16x128xf32>
    %32 = arith.truncf %31 : vector<16x128xf32> to vector<16x128xbf16>
    %cst_10 = arith.constant dense<0.000000e+00> : vector<16x16xf32>
    %33 = tpu.matmul %22, %32, %cst_10 {dimension_numbers = #tpu.dot_dimension_numbers<[1], [1], [0], [0], [0, 0, 1, 0], [], []>} : vector<16x128xbf16>, vector<16x128xbf16>, vector<16x16xf32> -> vector<16x16xf32>
    %cst_11 = arith.constant 0.0883883461 : f32
    %34 = vector.broadcast %cst_11 : f32 to vector<16x16xf32>
    %35 = arith.mulf %33, %34 : vector<16x16xf32>
    %cst_12 = arith.constant dense<0xFF800000> : vector<16xf32>
    %36 = vector.multi_reduction <maximumf>, %35, %cst_12 [1] : vector<16x16xf32> to vector<16xf32>
    %37 = vector.shape_cast %36 : vector<16xf32> to vector<16x1xf32>
    %38 = vector.broadcast %37 : vector<16x1xf32> to vector<16x16xf32>
    %39 = arith.subf %35, %38 : vector<16x16xf32>
    %40 = math.exp %39 : vector<16x16xf32>
    %cst_13 = arith.constant dense<0.000000e+00> : vector<16xf32>
    %41 = vector.multi_reduction <add>, %40, %cst_13 [1] : vector<16x16xf32> to vector<16xf32>
    %42 = vector.shape_cast %41 : vector<16xf32> to vector<16x1xf32>
    %43 = arith.truncf %40 : vector<16x16xf32> to vector<16x16xbf16>
    %44 = arith.truncf %12 : vector<16x128xf32> to vector<16x128xbf16>
    %cst_14 = arith.constant dense<0.000000e+00> : vector<16x128xf32>
    %45 = tpu.matmul %43, %44, %cst_14 {dimension_numbers = #tpu.dot_dimension_numbers<[1], [0], [0], [1], [0, 0, 1, 1], [], []>} : vector<16x16xbf16>, vector<16x128xbf16>, vector<16x128xf32> -> vector<16x128xf32>
    %46 = vector.broadcast %42 : vector<16x1xf32> to vector<16x128xf32>
    %47 = arith.divf %45, %46 : vector<16x128xf32>
    %48 = vector.extract_strided_slice %7 {offsets = [0, 128], sizes = [16, 128], strides = [1, 1]} : vector<16x768xf32> to vector<16x128xf32>
    %49 = vector.extract_strided_slice %7 {offsets = [0, 384], sizes = [16, 128], strides = [1, 1]} : vector<16x768xf32> to vector<16x128xf32>
    %50 = vector.extract_strided_slice %7 {offsets = [0, 640], sizes = [16, 128], strides = [1, 1]} : vector<16x768xf32> to vector<16x128xf32>
    %51 = vector.extract_strided_slice %48 {offsets = [0, 0], sizes = [16, 64], strides = [1, 1]} : vector<16x128xf32> to vector<16x64xf32>
    %52 = vector.extract_strided_slice %48 {offsets = [0, 64], sizes = [16, 64], strides = [1, 1]} : vector<16x128xf32> to vector<16x64xf32>
    %53 = arith.mulf %51, %8 : vector<16x64xf32>
    %54 = arith.mulf %52, %9 : vector<16x64xf32>
    %55 = arith.subf %53, %54 : vector<16x64xf32>
    %56 = arith.mulf %51, %9 : vector<16x64xf32>
    %57 = arith.mulf %52, %8 : vector<16x64xf32>
    %58 = arith.addf %56, %57 : vector<16x64xf32>
    %59 = tpu.concatenate %55, %58 in 1 : vector<16x64xf32>, vector<16x64xf32> -> vector<16x128xf32>
    %60 = arith.truncf %59 : vector<16x128xf32> to vector<16x128xbf16>
    %61 = vector.extract_strided_slice %49 {offsets = [0, 0], sizes = [16, 64], strides = [1, 1]} : vector<16x128xf32> to vector<16x64xf32>
    %62 = vector.extract_strided_slice %49 {offsets = [0, 64], sizes = [16, 64], strides = [1, 1]} : vector<16x128xf32> to vector<16x64xf32>
    %63 = arith.mulf %61, %8 : vector<16x64xf32>
    %64 = arith.mulf %62, %9 : vector<16x64xf32>
    %65 = arith.subf %63, %64 : vector<16x64xf32>
    %66 = arith.mulf %61, %9 : vector<16x64xf32>
    %67 = arith.mulf %62, %8 : vector<16x64xf32>
    %68 = arith.addf %66, %67 : vector<16x64xf32>
    %69 = tpu.concatenate %65, %68 in 1 : vector<16x64xf32>, vector<16x64xf32> -> vector<16x128xf32>
    %70 = arith.truncf %69 : vector<16x128xf32> to vector<16x128xbf16>
    %cst_15 = arith.constant dense<0.000000e+00> : vector<16x16xf32>
    %71 = tpu.matmul %60, %70, %cst_15 {dimension_numbers = #tpu.dot_dimension_numbers<[1], [1], [0], [0], [0, 0, 1, 0], [], []>} : vector<16x128xbf16>, vector<16x128xbf16>, vector<16x16xf32> -> vector<16x16xf32>
    %cst_16 = arith.constant 0.0883883461 : f32
    %72 = vector.broadcast %cst_16 : f32 to vector<16x16xf32>
    %73 = arith.mulf %71, %72 : vector<16x16xf32>
    %cst_17 = arith.constant dense<0xFF800000> : vector<16xf32>
    %74 = vector.multi_reduction <maximumf>, %73, %cst_17 [1] : vector<16x16xf32> to vector<16xf32>
    %75 = vector.shape_cast %74 : vector<16xf32> to vector<16x1xf32>
    %76 = vector.broadcast %75 : vector<16x1xf32> to vector<16x16xf32>
    %77 = arith.subf %73, %76 : vector<16x16xf32>
    %78 = math.exp %77 : vector<16x16xf32>
    %cst_18 = arith.constant dense<0.000000e+00> : vector<16xf32>
    %79 = vector.multi_reduction <add>, %78, %cst_18 [1] : vector<16x16xf32> to vector<16xf32>
    %80 = vector.shape_cast %79 : vector<16xf32> to vector<16x1xf32>
    %81 = arith.truncf %78 : vector<16x16xf32> to vector<16x16xbf16>
    %82 = arith.truncf %50 : vector<16x128xf32> to vector<16x128xbf16>
    %cst_19 = arith.constant dense<0.000000e+00> : vector<16x128xf32>
    %83 = tpu.matmul %81, %82, %cst_19 {dimension_numbers = #tpu.dot_dimension_numbers<[1], [0], [0], [1], [0, 0, 1, 1], [], []>} : vector<16x16xbf16>, vector<16x128xbf16>, vector<16x128xf32> -> vector<16x128xf32>
    %84 = vector.broadcast %80 : vector<16x1xf32> to vector<16x128xf32>
    %85 = arith.divf %83, %84 : vector<16x128xf32>
    %86 = tpu.concatenate %47, %85 in 1 : vector<16x128xf32>, vector<16x128xf32> -> vector<16x256xf32>
    %c0_20 = arith.constant 0 : index
    %c0_21 = arith.constant 0 : index
    %c0_22 = arith.constant 0 : index
    %87 = vector.load %arg6[%c0_20, %c0_21, %c0_22] : memref<1x16x256xf32, #tpu.memory_space<vmem>>, vector<1x16x256xf32>
    %88 = vector.shape_cast %87 : vector<1x16x256xf32> to vector<16x256xf32>
    %89 = vector.shape_cast %86 : vector<16x256xf32> to vector<1x16x256xf32>
    tpu.vector_store %arg6[%c0_20, %c0_21, %c0_22], %89 {strides = array<i32>} : memref<1x16x256xf32, #tpu.memory_space<vmem>>, vector<1x16x256xf32>,
    return
  }
  func.func @transform_0(%arg0: i32) -> (i32, i32, i32) {
    %c0_i32 = arith.constant 0 : i32
    %c0_i32_0 = arith.constant 0 : i32
    %c0_i32_1 = arith.constant 0 : i32
    return %arg0, %c0_i32, %c0_i32_0 : i32, i32, i32
  }
  func.func @transform_1(%arg0: i32) -> (i32, i32) {
    %c0_i32 = arith.constant 0 : i32
    %c0_i32_0 = arith.constant 0 : i32
    %c0_i32_1 = arith.constant 0 : i32
    return %c0_i32, %c0_i32_0 : i32, i32
  }
  func.func @transform_2(%arg0: i32) -> (i32, i32) {
    %c0_i32 = arith.constant 0 : i32
    %c0_i32_0 = arith.constant 0 : i32
    %c0_i32_1 = arith.constant 0 : i32
    return %c0_i32, %c0_i32_0 : i32, i32
  }
  func.func @transform_3(%arg0: i32) -> (i32, i32) {
    %c0_i32 = arith.constant 0 : i32
    %c0_i32_0 = arith.constant 0 : i32
    %c0_i32_1 = arith.constant 0 : i32
    return %c0_i32, %c0_i32_0 : i32, i32
  }
  func.func @transform_4(%arg0: i32) -> (i32, i32) {
    %c0_i32 = arith.constant 0 : i32
    %c0_i32_0 = arith.constant 0 : i32
    %c0_i32_1 = arith.constant 0 : i32
    return %c0_i32, %c0_i32_0 : i32, i32
  }
  func.func @transform_5(%arg0: i32) -> (i32, i32, i32) {
    %c0_i32 = arith.constant 0 : i32
    %c0_i32_0 = arith.constant 0 : i32
    %c0_i32_1 = arith.constant 0 : i32
    return %arg0, %c0_i32, %c0_i32_0 : i32, i32, i32
  }
}

</mosaic_0001>

<llo_original>
// kernel: tpu_custom_call.1
$region0: #{tpu_custom_call.1}
  #allocation0 [shape = 'u32[]', space=smem, size = 0x4, offset = 0x4, fixed_abs, tag = 'smem constant byte address 0x4 - core index']
  #allocation1 [shape = 'u32[144,128]{1,0:T(1,128)}', space=vmem, size = 0x12000, scoped, tag = 'internal scratch']
  %s0 = inlined_call_operand.hbm [shape: f32[2,16,256], index: 0, kind: input, shape index: {}]
  %s1 = inlined_call_operand.hbm [shape: bf16[256,768], index: 1, kind: input, shape index: {}]
  %s2 = inlined_call_operand.vmem [shape: f32[1,768], index: 2, kind: input, shape index: {}]
  %s3 = inlined_call_operand.hbm [shape: f32[16,64], index: 3, kind: input, shape index: {}]
  %s4 = inlined_call_operand.hbm [shape: f32[16,64], index: 4, kind: input, shape index: {}]
  %s5 = inlined_call_operand.hbm [shape: f32[2,16,256], index: 5, kind: output, shape index: {}]
  %s6 = sld [smem:[#allocation0]]
  $region69: #{tpu_custom_call.1} parent=0
    _
  %s8 = ssub.s32 1, %s6
  %s9 = scalar_select 0, %s8, %s6
  $region1: #{tpu_custom_call.1} parent=0
    #allocation2 [shape = 'u8[32768]{0}', space=vmem, size = 0x8000, scoped, tag = 'input window, operand 0']
    #allocation3 [shape = 's32[2]{0}', space=sflag, size = 0x8, scoped, tag = 'scoped memory for tpu_custom_call.1']
    #allocation4 [shape = 's32[2]{0}', space=sflag, size = 0x8, scoped, tag = 'scoped memory for tpu_custom_call.1']
    #allocation5 [shape = 'u8[393216]{0}', space=vmem, size = 0x60000, scoped, tag = 'input window, operand 1, single buffered']
    #allocation6 [shape = 's32[1]{0}', space=sflag, size = 0x4, scoped, tag = 'scoped memory for tpu_custom_call.1']
    #allocation7 [shape = 'u8[8192]{0}', space=vmem, size = 0x2000, scoped, tag = 'input window, operand 3, single buffered']
    #allocation8 [shape = 'u8[8192]{0}', space=vmem, size = 0x2000, scoped, tag = 'input window, operand 4, single buffered']
    #allocation9 [shape = 's32[1]{0}', space=sflag, size = 0x4, scoped, tag = 'scoped memory for tpu_custom_call.1']
    #allocation10 [shape = 'u8[32768]{0}', space=vmem, size = 0x8000, scoped, tag = 'output window, operand 0']
    %10 = vsyncpa [#allocation3], 0
    %s11 = scalar_lea.sflag [#allocation3], 1
    %12 = vsyncpa %s11, 0
    %13 = vsyncpa [#allocation6], 0
    %14 = vsyncpa [#allocation9], 0
    %15 = vsyncpa [#allocation4], 0
    %s16 = scalar_lea.sflag [#allocation4], 1
    %17 = vsyncpa %s16, 0
    loop: start=0, step=1, limit=4
    $region2: #{tpu_custom_call.1} parent=1 // loop_pre_header
      _
    $region3: #{tpu_custom_call.1} parent=1 // loop_header
      %s19 = sphi 0, %s23
      %p20 = scmp.ge.s32.totalorder %s19, 4
      %s29 = sphi 0, %s31
      %s32 = sphi 0, %s29
      %s33 = sphi 0, %s32
      %s49 = sphi 0, %s33
      %s53 = sphi 0, %s53
      %s55 = sphi 0, %s53
      %s56 = sphi 0, %s55
      %s70 = sphi 0, %s56
      %s74 = sphi 0, %s74
      %s76 = sphi 0, %s74
      %s77 = sphi 0, %s76
      %s91 = sphi 0, %s77
      %s95 = sphi 0, %s95
      %s97 = sphi 0, %s95
      %s98 = sphi 0, %s97
      %s112 = sphi 0, %s98
      %s116 = sphi 0, %s116
      %s118 = sphi 0, %s116
      %s119 = sphi 0, %s118
      %s133 = sphi 0, %s119
      %s139 = sphi 0, %s141
      %s142 = sphi 0, %s139
      %s143 = sphi 0, %s142
      %s159 = sphi 0, %s143
    $region4: #{tpu_custom_call.1} parent=1 // loop_header_branch
      %22 = sbr.rel (%p20) target = $region8
    $region5: #{tpu_custom_call.1} parent=1 // loop_body
      %s24 = ssub.s32 %s19, 1
      %s25 = ssub.s32 %s19, 2
      %s26 = sadd.s32 %s19, 1
      %s27 = ssub.s32 %s19, %s26
      %p28 = scmp.eq.s32.totalorder %s27, 0
      %s30 = sadd.s32 %s29, 1
      %s31 = scalar_select %p28, %s29, %s30
      %p34 = pneg %p28
      %p35 = scmp.eq.s32.totalorder %s19, 1
      %p36 = por %p34, %p35
      %p37 = scmp.ne.s32.totalorder %s29, %s32
      %p38 = scmp.eq.s32.totalorder %s19, 0
      %p39 = por %p37, %p38
      %p40 = scmp.ne.s32.totalorder %s29, %s32
      %p41 = scmp.eq.s32.totalorder %s24, 1
      %p42 = por %p40, %p41
      %p43 = scmp.ne.s32.totalorder %s32, %s33
      %p44 = scmp.eq.s32.totalorder %s24, 0
      %p45 = por %p43, %p44
      %p46 = scmp.ne.s32.totalorder %s32, %s33
      %p47 = scmp.eq.s32.totalorder %s25, 1
      %p48 = por %p46, %p47
      %p50 = scmp.ne.s32.totalorder %s33, %s49
      %p51 = scmp.eq.s32.totalorder %s25, 0
      %p52 = por %p50, %p51
      %s54 = sadd.s32 %s53, 1
      %p57 = scmp.eq.s32.totalorder %s19, 1
      %p58 = scmp.ne.s32.totalorder %s53, %s55
      %p59 = scmp.eq.s32.totalorder %s19, 0
      %p60 = por %p58, %p59
      %p61 = scmp.ne.s32.totalorder %s53, %s55
      %p62 = scmp.eq.s32.totalorder %s24, 1
      %p63 = por %p61, %p62
      %p64 = scmp.ne.s32.totalorder %s55, %s56
      %p65 = scmp.eq.s32.totalorder %s24, 0
      %p66 = por %p64, %p65
      %p67 = scmp.ne.s32.totalorder %s55, %s56
      %p68 = scmp.eq.s32.totalorder %s25, 1
      %p69 = por %p67, %p68
      %p71 = scmp.ne.s32.totalorder %s56, %s70
      %p72 = scmp.eq.s32.totalorder %s25, 0
      %p73 = por %p71, %p72
      %s75 = sadd.s32 %s74, 1
      %p78 = scmp.eq.s32.totalorder %s19, 1
      %p79 = scmp.ne.s32.totalorder %s74, %s76
      %p80 = scmp.eq.s32.totalorder %s19, 0
      %p81 = por %p79, %p80
      %p82 = scmp.ne.s32.totalorder %s74, %s76
      %p83 = scmp.eq.s32.totalorder %s24, 1
      %p84 = por %p82, %p83
      %p85 = scmp.ne.s32.totalorder %s76, %s77
      %p86 = scmp.eq.s32.totalorder %s24, 0
      %p87 = por %p85, %p86
      %p88 = scmp.ne.s32.totalorder %s76, %s77
      %p89 = scmp.eq.s32.totalorder %s25, 1
      %p90 = por %p88, %p89
      %p92 = scmp.ne.s32.totalorder %s77, %s91
      %p93 = scmp.eq.s32.totalorder %s25, 0
      %p94 = por %p92, %p93
      %s96 = sadd.s32 %s95, 1
      %p99 = scmp.eq.s32.totalorder %s19, 1
      %p100 = scmp.ne.s32.totalorder %s95, %s97
      %p101 = scmp.eq.s32.totalorder %s19, 0
      %p102 = por %p100, %p101
      %p103 = scmp.ne.s32.totalorder %s95, %s97
      %p104 = scmp.eq.s32.totalorder %s24, 1
      %p105 = por %p103, %p104
      %p106 = scmp.ne.s32.totalorder %s97, %s98
      %p107 = scmp.eq.s32.totalorder %s24, 0
      %p108 = por %p106, %p107
      %p109 = scmp.ne.s32.totalorder %s97, %s98
      %p110 = scmp.eq.s32.totalorder %s25, 1
      %p111 = por %p109, %p110
      %p113 = scmp.ne.s32.totalorder %s98, %s112
      %p114 = scmp.eq.s32.totalorder %s25, 0
      %p115 = por %p113, %p114
      %s117 = sadd.s32 %s116, 1
      %p120 = scmp.eq.s32.totalorder %s19, 1
      %p121 = scmp.ne.s32.totalorder %s116, %s118
      %p122 = scmp.eq.s32.totalorder %s19, 0
      %p123 = por %p121, %p122
      %p124 = scmp.ne.s32.totalorder %s116, %s118
      %p125 = scmp.eq.s32.totalorder %s24, 1
      %p126 = por %p124, %p125
      %p127 = scmp.ne.s32.totalorder %s118, %s119
      %p128 = scmp.eq.s32.totalorder %s24, 0
      %p129 = por %p127, %p128
      %p130 = scmp.ne.s32.totalorder %s118, %s119
      %p131 = scmp.eq.s32.totalorder %s25, 1
      %p132 = por %p130, %p131
      %p134 = scmp.ne.s32.totalorder %s119, %s133
      %p135 = scmp.eq.s32.totalorder %s25, 0
      %p136 = por %p134, %p135
      %s137 = ssub.s32 %s19, %s26
      %p138 = scmp.eq.s32.totalorder %s137, 0
      %s140 = sadd.s32 %s139, 1
      %s141 = scalar_select %p138, %s139, %s140
      %p144 = pneg %p138
      %p145 = scmp.eq.s32.totalorder %s19, 1
      %p146 = por %p144, %p145
      %p147 = scmp.ne.s32.totalorder %s139, %s142
      %p148 = scmp.eq.s32.totalorder %s19, 0
      %p149 = por %p147, %p148
      %p150 = scmp.ne.s32.totalorder %s139, %s142
      %p151 = scmp.eq.s32.totalorder %s24, 1
      %p152 = por %p150, %p151
      %p153 = scmp.ne.s32.totalorder %s142, %s143
      %p154 = scmp.eq.s32.totalorder %s24, 0
      %p155 = por %p153, %p154
      %p156 = scmp.ne.s32.totalorder %s142, %s143
      %p157 = scmp.eq.s32.totalorder %s25, 1
      %p158 = por %p156, %p157
      %p160 = scmp.ne.s32.totalorder %s143, %s159
      %p161 = scmp.eq.s32.totalorder %s25, 0
      %p162 = por %p160, %p161
      %p163 = scmp.le.s32.totalorder 1, %s19
      %p164 = scmp.lt.s32.totalorder %s19, 3
      %p165 = pnand %p163, %p164
      %p166 = pneg %p165
      // Predicated region
      $region9: #{tpu_custom_call.1} parent=5 // pred_check
        _
      $region10: #{tpu_custom_call.1} parent=5 // pred_check_branch
        %168 = sbr.rel (%p165) target = $region12
      $region11: #{tpu_custom_call.1} parent=5 // pred_region
        %s169 = ssub.s32 %s19, 1
        // Predicated region
        $region13: #{tpu_custom_call.1} parent=11 // pred_check
          %p170 = pneg %p66
        $region14: #{tpu_custom_call.1} parent=11 // pred_check_branch
          %172 = sbr.rel (%p170) target = $region16
        $region15: #{tpu_custom_call.1} parent=11 // pred_region
          %s174 = ssub.s32 12288, 12288
          %175 = vsyncadd [#allocation6], %s174
          %s176 = sshll.u32 [#allocation5], 4
          %s177 = int_to_ptr.vmem [resolvable:$true] %s176
          %182 = dma.hbm_to_vmem [thread:$0]  %s1, 12288, %s177, [#allocation6], 384, 384, 24
        $region16: #{tpu_custom_call.1} parent=11 // pred_fallthru
          _
        // Predicated region
        $region17: #{tpu_custom_call.1} parent=11 // pred_check
          %p183 = pneg %p87
        $region18: #{tpu_custom_call.1} parent=11 // pred_check_branch
          %185 = sbr.rel (%p183) target = $region20
        $region19: #{tpu_custom_call.1} parent=11 // pred_region
          _
        $region20: #{tpu_custom_call.1} parent=11 // pred_fallthru
          _
        // Predicated region
        $region21: #{tpu_custom_call.1} parent=11 // pred_check
          %p186 = pneg %p108
        $region22: #{tpu_custom_call.1} parent=11 // pred_check_branch
          %188 = sbr.rel (%p186) target = $region24
        $region23: #{tpu_custom_call.1} parent=11 // pred_region
          %s190 = ssub.s32 256, 256
          %191 = vsyncadd [#allocation6], %s190
          %s192 = sshll.u32 [#allocation7], 4
          %s193 = int_to_ptr.vmem [resolvable:$true] %s192
          %198 = dma.hbm_to_vmem [thread:$0]  %s3, 256, %s193, [#allocation6], 128, 128, 8
        $region24: #{tpu_custom_call.1} parent=11 // pred_fallthru
          _
        // Predicated region
        $region25: #{tpu_custom_call.1} parent=11 // pred_check
          %p199 = pneg %p129
        $region26: #{tpu_custom_call.1} parent=11 // pred_check_branch
          %201 = sbr.rel (%p199) target = $region28
        $region27: #{tpu_custom_call.1} parent=11 // pred_region
          %s203 = ssub.s32 256, 256
          %204 = vsyncadd [#allocation9], %s203
          %s205 = sshll.u32 [#allocation8], 4
          %s206 = int_to_ptr.vmem [resolvable:$true] %s205
          %211 = dma.hbm_to_vmem [thread:$0]  %s4, 256, %s206, [#allocation9], 128, 128, 8
        $region28: #{tpu_custom_call.1} parent=11 // pred_fallthru
          _
      $region12: #{tpu_custom_call.1} parent=5 // pred_fallthru
        _
      %p212 = scmp.lt.s32.totalorder %s19, 2
      // Predicated region
      $region29: #{tpu_custom_call.1} parent=5 // pred_check
        %p213 = pneg %p212
      $region30: #{tpu_custom_call.1} parent=5 // pred_check_branch
        %215 = sbr.rel (%p213) target = $region32
      $region31: #{tpu_custom_call.1} parent=5 // pred_region
        // Predicated region
        $region33: #{tpu_custom_call.1} parent=31 // pred_check
          %p216 = pneg %p39
        $region34: #{tpu_custom_call.1} parent=31 // pred_check_branch
          %218 = sbr.rel (%p216) target = $region36
        $region35: #{tpu_custom_call.1} parent=31 // pred_region
          %s219 = sand.u32 %s29, 1
          %s220 = scalar_lea.sflag [#allocation3], %s219
          %s221 = sand.u32 %s29, 1
          %s222 = smul.addr %s221, 32
          %s223 = scalar_lea.vmem [#allocation2], %s222
          %s225 = ssub.s32 512, 512
          %226 = vsyncadd %s220, %s225
          %s227 = smul.addr %s19, 4
          %s228 = smul.addr %s227, 128
          %s229 = scalar_lea.hbm %s0, %s228
          %s230 = sshll.u32 %s223, 4
          %s231 = int_to_ptr.vmem [resolvable:$true] %s230
          %236 = dma.hbm_to_vmem [thread:$0]  %s229, 512, %s231, %s220, 256, 256, 16
        $region36: #{tpu_custom_call.1} parent=31 // pred_fallthru
          _
      $region32: #{tpu_custom_call.1} parent=5 // pred_fallthru
        _
      %p237 = scmp.le.s32.totalorder 1, %s19
      %p238 = scmp.lt.s32.totalorder %s19, 3
      %p239 = pnand %p237, %p238
      %p240 = pneg %p239
      // Predicated region
      $region37: #{tpu_custom_call.1} parent=5 // pred_check
        _
      $region38: #{tpu_custom_call.1} parent=5 // pred_check_branch
        %242 = sbr.rel (%p239) target = $region40
      $region39: #{tpu_custom_call.1} parent=5 // pred_region
        %s243 = ssub.s32 %s19, 1
        %s244 = sand.u32 %s32, 1
        %s245 = scalar_lea.sflag [#allocation3], %s244
        %s246 = sand.u32 %s32, 1
        %s247 = smul.addr %s246, 32
        %s248 = scalar_lea.vmem [#allocation2], %s247
        // Predicated region
        $region41: #{tpu_custom_call.1} parent=39 // pred_check
          %p249 = pneg %p45
        $region42: #{tpu_custom_call.1} parent=39 // pred_check_branch
          %251 = sbr.rel (%p249) target = $region44
        $region43: #{tpu_custom_call.1} parent=39 // pred_region
          %252 = dma.done %s245, 512
        $region44: #{tpu_custom_call.1} parent=39 // pred_fallthru
          _
        // Predicated region
        $region45: #{tpu_custom_call.1} parent=39 // pred_check
          %p253 = pneg %p66
        $region46: #{tpu_custom_call.1} parent=39 // pred_check_branch
          %255 = sbr.rel (%p253) target = $region48
        $region47: #{tpu_custom_call.1} parent=39 // pred_region
          %256 = dma.done [#allocation6], 12288
        $region48: #{tpu_custom_call.1} parent=39 // pred_fallthru
          _
        // Predicated region
        $region49: #{tpu_custom_call.1} parent=39 // pred_check
          %p257 = pneg %p108
        $region50: #{tpu_custom_call.1} parent=39 // pred_check_branch
          %259 = sbr.rel (%p257) target = $region52
        $region51: #{tpu_custom_call.1} parent=39 // pred_region
          %260 = dma.done [#allocation6], 256
        $region52: #{tpu_custom_call.1} parent=39 // pred_fallthru
          _
        // Predicated region
        $region53: #{tpu_custom_call.1} parent=39 // pred_check
          %p261 = pneg %p129
        $region54: #{tpu_custom_call.1} parent=39 // pred_check_branch
          %263 = sbr.rel (%p261) target = $region56
        $region55: #{tpu_custom_call.1} parent=39 // pred_region
          %264 = dma.done [#allocation9], 256
        $region56: #{tpu_custom_call.1} parent=39 // pred_fallthru
          _
        %s265 = sand.u32 %s32, 1
        %s266 = scalar_lea.sflag [#allocation3], %s265
        %s267 = sand.u32 %s32, 1
        %s268 = smul.addr %s267, 32
        %s269 = scalar_lea.vmem [#allocation2], %s268
        %p270 = pneg %p45
        %p271 = pneg %p42
        %p272 = pneg %p66
        %p273 = pneg %p63
        %p274 = pneg %p87
        %p275 = pneg %p84
        %p276 = pneg %p108
        %p277 = pneg %p105
        %p278 = pneg %p129
        %p279 = pneg %p126
        %p280 = pneg %p155
        %p281 = pneg %p152
        %s282 = sand.u32 %s142, 1
        %s283 = scalar_lea.sflag [#allocation4], %s282
        %s284 = sand.u32 %s142, 1
        %s285 = smul.addr %s284, 32
        %s286 = scalar_lea.vmem [#allocation10], %s285
        %v288 = vld [vmem:[%s248] sm:$0xff]
        %v289 = vld [vmem:[%s248 + $0x8] sm:$0xff]
        %v290 = vld [vmem:[%s248 + $0x10] sm:$0xff]
        %v291 = vld [vmem:[%s248 + $0x18] sm:$0xff]
        %v292 = vpack.c.bf16 %v290, %v288
        %v293 = vpack.c.bf16 %v291, %v289
        %v294 = vld [vmem:[#allocation5] sm:$0xff]
        %v295 = vld [vmem:[#allocation5 + $0x8] sm:$0xff]
        %v296 = vld [vmem:[#allocation5 + $0x10] sm:$0xff]
        %v297 = vld [vmem:[#allocation5 + $0x18] sm:$0xff]
        %v298 = vld [vmem:[#allocation5 + $0x20] sm:$0xff]
        %v299 = vld [vmem:[#allocation5 + $0x28] sm:$0xff]
        %v300 = vld [vmem:[#allocation5 + $0x30] sm:$0xff]
        %v301 = vld [vmem:[#allocation5 + $0x38] sm:$0xff]
        %v302 = vld [vmem:[#allocation5 + $0x40] sm:$0xff]
        %v303 = vld [vmem:[#allocation5 + $0x48] sm:$0xff]
        %v304 = vld [vmem:[#allocation5 + $0x50] sm:$0xff]
        %v305 = vld [vmem:[#allocation5 + $0x58] sm:$0xff]
        %v306 = vld [vmem:[#allocation5 + $0x60] sm:$0xff]
        %v307 = vld [vmem:[#allocation5 + $0x68] sm:$0xff]
        %v308 = vld [vmem:[#allocation5 + $0x70] sm:$0xff]
        %v309 = vld [vmem:[#allocation5 + $0x78] sm:$0xff]
        %v310 = vld [vmem:[#allocation5 + $0x80] sm:$0xff]
        %v311 = vld [vmem:[#allocation5 + $0x88] sm:$0xff]
        %v312 = vld [vmem:[#allocation5 + $0x90] sm:$0xff]
        %v313 = vld [vmem:[#allocation5 + $0x98] sm:$0xff]
        %v314 = vld [vmem:[#allocation5 + $0xa0] sm:$0xff]
        %v315 = vld [vmem:[#allocation5 + $0xa8] sm:$0xff]
        %v316 = vld [vmem:[#allocation5 + $0xb0] sm:$0xff]
        %v317 = vld [vmem:[#allocation5 + $0xb8] sm:$0xff]
        %v318 = vld [vmem:[#allocation5 + $0xc0] sm:$0xff]
        %v319 = vld [vmem:[#allocation5 + $0xc8] sm:$0xff]
        %v320 = vld [vmem:[#allocation5 + $0xd0] sm:$0xff]
        %v321 = vld [vmem:[#allocation5 + $0xd8] sm:$0xff]
        %v322 = vld [vmem:[#allocation5 + $0xe0] sm:$0xff]
        %v323 = vld [vmem:[#allocation5 + $0xe8] sm:$0xff]
        %v324 = vld [vmem:[#allocation5 + $0xf0] sm:$0xff]
        %v325 = vld [vmem:[#allocation5 + $0xf8] sm:$0xff]
        %v326 = vld [vmem:[#allocation5 + $0x100] sm:$0xff]
        %v327 = vld [vmem:[#allocation5 + $0x108] sm:$0xff]
        %v328 = vld [vmem:[#allocation5 + $0x110] sm:$0xff]
        %v329 = vld [vmem:[#allocation5 + $0x118] sm:$0xff]
        %v330 = vld [vmem:[#allocation5 + $0x120] sm:$0xff]
        %v331 = vld [vmem:[#allocation5 + $0x128] sm:$0xff]
        %v332 = vld [vmem:[#allocation5 + $0x130] sm:$0xff]
        %v333 = vld [vmem:[#allocation5 + $0x138] sm:$0xff]
        %v334 = vld [vmem:[#allocation5 + $0x140] sm:$0xff]
        %v335 = vld [vmem:[#allocation5 + $0x148] sm:$0xff]
        %v336 = vld [vmem:[#allocation5 + $0x150] sm:$0xff]
        %v337 = vld [vmem:[#allocation5 + $0x158] sm:$0xff]
        %v338 = vld [vmem:[#allocation5 + $0x160] sm:$0xff]
        %v339 = vld [vmem:[#allocation5 + $0x168] sm:$0xff]
        %v340 = vld [vmem:[#allocation5 + $0x170] sm:$0xff]
        %v341 = vld [vmem:[#allocation5 + $0x178] sm:$0xff]
        %v342 = vld [vmem:[#allocation5 + $0x180] sm:$0xff]
        %v343 = vld [vmem:[#allocation5 + $0x188] sm:$0xff]
        %v344 = vld [vmem:[#allocation5 + $0x190] sm:$0xff]
        %v345 = vld [vmem:[#allocation5 + $0x198] sm:$0xff]
        %v346 = vld [vmem:[#allocation5 + $0x1a0] sm:$0xff]
        %v347 = vld [vmem:[#allocation5 + $0x1a8] sm:$0xff]
        %v348 = vld [vmem:[#allocation5 + $0x1b0] sm:$0xff]
        %v349 = vld [vmem:[#allocation5 + $0x1b8] sm:$0xff]
        %v350 = vld [vmem:[#allocation5 + $0x1c0] sm:$0xff]
        %v351 = vld [vmem:[#allocation5 + $0x1c8] sm:$0xff]
        %v352 = vld [vmem:[#allocation5 + $0x1d0] sm:$0xff]
        %v353 = vld [vmem:[#allocation5 + $0x1d8] sm:$0xff]
        %v354 = vld [vmem:[#allocation5 + $0x1e0] sm:$0xff]
        %v355 = vld [vmem:[#allocation5 + $0x1e8] sm:$0xff]
        %v356 = vld [vmem:[#allocation5 + $0x1f0] sm:$0xff]
        %v357 = vld [vmem:[#allocation5 + $0x1f8] sm:$0xff]
        %v358 = vld [vmem:[#allocation5 + $0x200] sm:$0xff]
        %v359 = vld [vmem:[#allocation5 + $0x208] sm:$0xff]
        %v360 = vld [vmem:[#allocation5 + $0x210] sm:$0xff]
        %v361 = vld [vmem:[#allocation5 + $0x218] sm:$0xff]
        %v362 = vld [vmem:[#allocation5 + $0x220] sm:$0xff]
        %v363 = vld [vmem:[#allocation5 + $0x228] sm:$0xff]
        %v364 = vld [vmem:[#allocation5 + $0x230] sm:$0xff]
        %v365 = vld [vmem:[#allocation5 + $0x238] sm:$0xff]
        %v366 = vld [vmem:[#allocation5 + $0x240] sm:$0xff]
        %v367 = vld [vmem:[#allocation5 + $0x248] sm:$0xff]
        %v368 = vld [vmem:[#allocation5 + $0x250] sm:$0xff]
        %v369 = vld [vmem:[#allocation5 + $0x258] sm:$0xff]
        %v370 = vld [vmem:[#allocation5 + $0x260] sm:$0xff]
        %v371 = vld [vmem:[#allocation5 + $0x268] sm:$0xff]
        %v372 = vld [vmem:[#allocation5 + $0x270] sm:$0xff]
        %v373 = vld [vmem:[#allocation5 + $0x278] sm:$0xff]
        %v374 = vld [vmem:[#allocation5 + $0x280] sm:$0xff]
        %v375 = vld [vmem:[#allocation5 + $0x288] sm:$0xff]
        %v376 = vld [vmem:[#allocation5 + $0x290] sm:$0xff]
        %v377 = vld [vmem:[#allocation5 + $0x298] sm:$0xff]
        %v378 = vld [vmem:[#allocation5 + $0x2a0] sm:$0xff]
        %v379 = vld [vmem:[#allocation5 + $0x2a8] sm:$0xff]
        %v380 = vld [vmem:[#allocation5 + $0x2b0] sm:$0xff]
        %v381 = vld [vmem:[#allocation5 + $0x2b8] sm:$0xff]
        %v382 = vld [vmem:[#allocation5 + $0x2c0] sm:$0xff]
        %v383 = vld [vmem:[#allocation5 + $0x2c8] sm:$0xff]
        %v384 = vld [vmem:[#allocation5 + $0x2d0] sm:$0xff]
        %v385 = vld [vmem:[#allocation5 + $0x2d8] sm:$0xff]
        %v386 = vld [vmem:[#allocation5 + $0x2e0] sm:$0xff]
        %v387 = vld [vmem:[#allocation5 + $0x2e8] sm:$0xff]
        %v388 = vld [vmem:[#allocation5 + $0x2f0] sm:$0xff]
        %v389 = vld [vmem:[#allocation5 + $0x2f8] sm:$0xff]
        %v390 = vld [vmem:[%s2] sm:$0x3f]
        %v392 = vlaneseq
        %v393 = vshrl.u32 %v392, 7
        %v394 = vsub.s32 0, %v393
        %v395 = vrot.slane %v390, %v394
        %v396 = vlaneseq
        %v397 = vshrl.u32 %v396, 7
        %v398 = vsub.s32 1, %v397
        %v399 = vrot.slane %v390, %v398
        %v400 = vlaneseq
        %v401 = vshrl.u32 %v400, 7
        %v402 = vsub.s32 2, %v401
        %v403 = vrot.slane %v390, %v402
        %v404 = vlaneseq
        %v405 = vshrl.u32 %v404, 7
        %v406 = vsub.s32 3, %v405
        %v407 = vrot.slane %v390, %v406
        %v408 = vlaneseq
        %v409 = vshrl.u32 %v408, 7
        %v410 = vsub.s32 4, %v409
        %v411 = vrot.slane %v390, %v410
        %v412 = vlaneseq
        %v413 = vshrl.u32 %v412, 7
        %v414 = vsub.s32 5, %v413
        %v415 = vrot.slane %v390, %v414
        %v518 = vunpack.c.l.b16 %v294
        %v519 = vunpack.c.h.b16 %v294
        %v520 = vunpack.c.l.b16 %v295
        %v521 = vunpack.c.h.b16 %v295
        %v522 = vunpack.c.l.b16 %v296
        %v523 = vunpack.c.h.b16 %v296
        %v524 = vunpack.c.l.b16 %v297
        %v525 = vunpack.c.h.b16 %v297
        %v526 = vunpack.c.l.b16 %v298
        %v527 = vunpack.c.h.b16 %v298
        %v528 = vunpack.c.l.b16 %v299
        %v529 = vunpack.c.h.b16 %v299
        %v530 = vunpack.c.l.b16 %v300
        %v531 = vunpack.c.h.b16 %v300
        %v532 = vunpack.c.l.b16 %v301
        %v533 = vunpack.c.h.b16 %v301
        %v534 = vunpack.c.l.b16 %v302
        %v535 = vunpack.c.h.b16 %v302
        %v536 = vunpack.c.l.b16 %v303
        %v537 = vunpack.c.h.b16 %v303
        %v538 = vunpack.c.l.b16 %v304
        %v539 = vunpack.c.h.b16 %v304
        %v540 = vunpack.c.l.b16 %v305
        %v541 = vunpack.c.h.b16 %v305
        %v542 = vunpack.c.l.b16 %v306
        %v543 = vunpack.c.h.b16 %v306
        %v544 = vunpack.c.l.b16 %v307
        %v545 = vunpack.c.h.b16 %v307
        %v546 = vunpack.c.l.b16 %v308
        %v547 = vunpack.c.h.b16 %v308
        %v548 = vunpack.c.l.b16 %v309
        %v549 = vunpack.c.h.b16 %v309
        %v550 = vunpack.c.l.b16 %v310
        %v551 = vunpack.c.h.b16 %v310
        %v552 = vunpack.c.l.b16 %v311
        %v553 = vunpack.c.h.b16 %v311
        %v554 = vunpack.c.l.b16 %v312
        %v555 = vunpack.c.h.b16 %v312
        %v556 = vunpack.c.l.b16 %v313
        %v557 = vunpack.c.h.b16 %v313
        %v558 = vunpack.c.l.b16 %v314
        %v559 = vunpack.c.h.b16 %v314
        %v560 = vunpack.c.l.b16 %v315
        %v561 = vunpack.c.h.b16 %v315
        %v562 = vunpack.c.l.b16 %v316
        %v563 = vunpack.c.h.b16 %v316
        %v564 = vunpack.c.l.b16 %v317
        %v565 = vunpack.c.h.b16 %v317
        %v566 = vunpack.c.l.b16 %v318
        %v567 = vunpack.c.h.b16 %v318
        %v568 = vunpack.c.l.b16 %v319
        %v569 = vunpack.c.h.b16 %v319
        %v570 = vunpack.c.l.b16 %v320
        %v571 = vunpack.c.h.b16 %v320
        %v572 = vunpack.c.l.b16 %v321
        %v573 = vunpack.c.h.b16 %v321
        %v574 = vunpack.c.l.b16 %v322
        %v575 = vunpack.c.h.b16 %v322
        %v576 = vunpack.c.l.b16 %v323
        %v577 = vunpack.c.h.b16 %v323
        %v578 = vunpack.c.l.b16 %v324
        %v579 = vunpack.c.h.b16 %v324
        %v580 = vunpack.c.l.b16 %v325
        %v581 = vunpack.c.h.b16 %v325
        %v582 = vunpack.c.l.b16 %v326
        %v583 = vunpack.c.h.b16 %v326
        %v584 = vunpack.c.l.b16 %v327
        %v585 = vunpack.c.h.b16 %v327
        %v586 = vunpack.c.l.b16 %v328
        %v587 = vunpack.c.h.b16 %v328
        %v588 = vunpack.c.l.b16 %v329
        %v589 = vunpack.c.h.b16 %v329
        %v590 = vunpack.c.l.b16 %v330
        %v591 = vunpack.c.h.b16 %v330
        %v592 = vunpack.c.l.b16 %v331
        %v593 = vunpack.c.h.b16 %v331
        %v594 = vunpack.c.l.b16 %v332
        %v595 = vunpack.c.h.b16 %v332
        %v596 = vunpack.c.l.b16 %v333
        %v597 = vunpack.c.h.b16 %v333
        %v598 = vunpack.c.l.b16 %v334
        %v599 = vunpack.c.h.b16 %v334
        %v600 = vunpack.c.l.b16 %v335
        %v601 = vunpack.c.h.b16 %v335
        %v602 = vunpack.c.l.b16 %v336
        %v603 = vunpack.c.h.b16 %v336
        %v604 = vunpack.c.l.b16 %v337
        %v605 = vunpack.c.h.b16 %v337
        %v606 = vunpack.c.l.b16 %v338
        %v607 = vunpack.c.h.b16 %v338
        %v608 = vunpack.c.l.b16 %v339
        %v609 = vunpack.c.h.b16 %v339
        %v610 = vunpack.c.l.b16 %v340
        %v611 = vunpack.c.h.b16 %v340
        %v612 = vunpack.c.l.b16 %v341
        %v613 = vunpack.c.h.b16 %v341
        %v614 = vunpack.c.l.b16 %v342
        %v615 = vunpack.c.h.b16 %v342
        %v616 = vunpack.c.l.b16 %v343
        %v617 = vunpack.c.h.b16 %v343
        %v618 = vunpack.c.l.b16 %v344
        %v619 = vunpack.c.h.b16 %v344
        %v620 = vunpack.c.l.b16 %v345
        %v621 = vunpack.c.h.b16 %v345
        %v622 = vunpack.c.l.b16 %v346
        %v623 = vunpack.c.h.b16 %v346
        %v624 = vunpack.c.l.b16 %v347
        %v625 = vunpack.c.h.b16 %v347
        %v626 = vunpack.c.l.b16 %v348
        %v627 = vunpack.c.h.b16 %v348
        %v628 = vunpack.c.l.b16 %v349
        %v629 = vunpack.c.h.b16 %v349
        %v630 = vunpack.c.l.b16 %v350
        %v631 = vunpack.c.h.b16 %v350
        %v632 = vunpack.c.l.b16 %v351
        %v633 = vunpack.c.h.b16 %v351
        %v634 = vunpack.c.l.b16 %v352
        %v635 = vunpack.c.h.b16 %v352
        %v636 = vunpack.c.l.b16 %v353
        %v637 = vunpack.c.h.b16 %v353
        %v638 = vunpack.c.l.b16 %v354
        %v639 = vunpack.c.h.b16 %v354
        %v640 = vunpack.c.l.b16 %v355
        %v641 = vunpack.c.h.b16 %v355
        %v642 = vunpack.c.l.b16 %v356
        %v643 = vunpack.c.h.b16 %v356
        %v644 = vunpack.c.l.b16 %v357
        %v645 = vunpack.c.h.b16 %v357
        %v646 = vunpack.c.l.b16 %v358
        %v647 = vunpack.c.h.b16 %v358
        %v648 = vunpack.c.l.b16 %v359
        %v649 = vunpack.c.h.b16 %v359
        %v650 = vunpack.c.l.b16 %v360
        %v651 = vunpack.c.h.b16 %v360
        %v652 = vunpack.c.l.b16 %v361
        %v653 = vunpack.c.h.b16 %v361
        %v654 = vunpack.c.l.b16 %v362
        %v655 = vunpack.c.h.b16 %v362
        %v656 = vunpack.c.l.b16 %v363
        %v657 = vunpack.c.h.b16 %v363
        %v658 = vunpack.c.l.b16 %v364
        %v659 = vunpack.c.h.b16 %v364
        %v660 = vunpack.c.l.b16 %v365
        %v661 = vunpack.c.h.b16 %v365
        %v662 = vunpack.c.l.b16 %v366
        %v663 = vunpack.c.h.b16 %v366
        %v664 = vunpack.c.l.b16 %v367
        %v665 = vunpack.c.h.b16 %v367
        %v666 = vunpack.c.l.b16 %v368
        %v667 = vunpack.c.h.b16 %v368
        %v668 = vunpack.c.l.b16 %v369
        %v669 = vunpack.c.h.b16 %v369
        %v670 = vunpack.c.l.b16 %v370
        %v671 = vunpack.c.h.b16 %v370
        %v672 = vunpack.c.l.b16 %v371
        %v673 = vunpack.c.h.b16 %v371
        %v674 = vunpack.c.l.b16 %v372
        %v675 = vunpack.c.h.b16 %v372
        %v676 = vunpack.c.l.b16 %v373
        %v677 = vunpack.c.h.b16 %v373
        %v678 = vunpack.c.l.b16 %v374
        %v679 = vunpack.c.h.b16 %v374
        %v680 = vunpack.c.l.b16 %v375
        %v681 = vunpack.c.h.b16 %v375
        %v682 = vunpack.c.l.b16 %v376
        %v683 = vunpack.c.h.b16 %v376
        %v684 = vunpack.c.l.b16 %v377
        %v685 = vunpack.c.h.b16 %v377
        %v686 = vunpack.c.l.b16 %v378
        %v687 = vunpack.c.h.b16 %v378
        %v688 = vunpack.c.l.b16 %v379
        %v689 = vunpack.c.h.b16 %v379
        %v690 = vunpack.c.l.b16 %v380
        %v691 = vunpack.c.h.b16 %v380
        %v692 = vunpack.c.l.b16 %v381
        %v693 = vunpack.c.h.b16 %v381
        %v694 = vunpack.c.l.b16 %v382
        %v695 = vunpack.c.h.b16 %v382
        %v696 = vunpack.c.l.b16 %v383
        %v697 = vunpack.c.h.b16 %v383
        %v698 = vunpack.c.l.b16 %v384
        %v699 = vunpack.c.h.b16 %v384
        %v700 = vunpack.c.l.b16 %v385
        %v701 = vunpack.c.h.b16 %v385
        %v702 = vunpack.c.l.b16 %v386
        %v703 = vunpack.c.h.b16 %v386
        %v704 = vunpack.c.l.b16 %v387
        %v705 = vunpack.c.h.b16 %v387
        %v706 = vunpack.c.l.b16 %v388
        %v707 = vunpack.c.h.b16 %v388
        %v708 = vunpack.c.l.b16 %v389
        %v709 = vunpack.c.h.b16 %v389
        %v710 = vpack.c.b16 %v524, %v518
        %v711 = vpack.c.b16 %v525, %v519
        %v712 = vpack.c.b16 %v526, %v520
        %v713 = vpack.c.b16 %v527, %v521
        %v714 = vpack.c.b16 %v528, %v522
        %v715 = vpack.c.b16 %v529, %v523
        %v716 = vpack.c.b16 %v536, %v530
        %v717 = vpack.c.b16 %v537, %v531
        %v718 = vpack.c.b16 %v538, %v532
        %v719 = vpack.c.b16 %v539, %v533
        %v720 = vpack.c.b16 %v540, %v534
        %v721 = vpack.c.b16 %v541, %v535
        %v722 = vpack.c.b16 %v548, %v542
        %v723 = vpack.c.b16 %v549, %v543
        %v724 = vpack.c.b16 %v550, %v544
        %v725 = vpack.c.b16 %v551, %v545
        %v726 = vpack.c.b16 %v552, %v546
        %v727 = vpack.c.b16 %v553, %v547
        %v728 = vpack.c.b16 %v560, %v554
        %v729 = vpack.c.b16 %v561, %v555
        %v730 = vpack.c.b16 %v562, %v556
        %v731 = vpack.c.b16 %v563, %v557
        %v732 = vpack.c.b16 %v564, %v558
        %v733 = vpack.c.b16 %v565, %v559
        %v734 = vpack.c.b16 %v572, %v566
        %v735 = vpack.c.b16 %v573, %v567
        %v736 = vpack.c.b16 %v574, %v568
        %v737 = vpack.c.b16 %v575, %v569
        %v738 = vpack.c.b16 %v576, %v570
        %v739 = vpack.c.b16 %v577, %v571
        %v740 = vpack.c.b16 %v584, %v578
        %v741 = vpack.c.b16 %v585, %v579
        %v742 = vpack.c.b16 %v586, %v580
        %v743 = vpack.c.b16 %v587, %v581
        %v744 = vpack.c.b16 %v588, %v582
        %v745 = vpack.c.b16 %v589, %v583
        %v746 = vpack.c.b16 %v596, %v590
        %v747 = vpack.c.b16 %v597, %v591
        %v748 = vpack.c.b16 %v598, %v592
        %v749 = vpack.c.b16 %v599, %v593
        %v750 = vpack.c.b16 %v600, %v594
        %v751 = vpack.c.b16 %v601, %v595
        %v752 = vpack.c.b16 %v608, %v602
        %v753 = vpack.c.b16 %v609, %v603
        %v754 = vpack.c.b16 %v610, %v604
        %v755 = vpack.c.b16 %v611, %v605
        %v756 = vpack.c.b16 %v612, %v606
        %v757 = vpack.c.b16 %v613, %v607
        %v758 = vpack.c.b16 %v620, %v614
        %v759 = vpack.c.b16 %v621, %v615
        %v760 = vpack.c.b16 %v622, %v616
        %v761 = vpack.c.b16 %v623, %v617
        %v762 = vpack.c.b16 %v624, %v618
        %v763 = vpack.c.b16 %v625, %v619
        %v764 = vpack.c.b16 %v632, %v626
        %v765 = vpack.c.b16 %v633, %v627
        %v766 = vpack.c.b16 %v634, %v628
        %v767 = vpack.c.b16 %v635, %v629
        %v768 = vpack.c.b16 %v636, %v630
        %v769 = vpack.c.b16 %v637, %v631
        %v770 = vpack.c.b16 %v644, %v638
        %v771 = vpack.c.b16 %v645, %v639
        %v772 = vpack.c.b16 %v646, %v640
        %v773 = vpack.c.b16 %v647, %v641
        %v774 = vpack.c.b16 %v648, %v642
        %v775 = vpack.c.b16 %v649, %v643
        %v776 = vpack.c.b16 %v656, %v650
        %v777 = vpack.c.b16 %v657, %v651
        %v778 = vpack.c.b16 %v658, %v652
        %v779 = vpack.c.b16 %v659, %v653
        %v780 = vpack.c.b16 %v660, %v654
        %v781 = vpack.c.b16 %v661, %v655
        %v782 = vpack.c.b16 %v668, %v662
        %v783 = vpack.c.b16 %v669, %v663
        %v784 = vpack.c.b16 %v670, %v664
        %v785 = vpack.c.b16 %v671, %v665
        %v786 = vpack.c.b16 %v672, %v666
        %v787 = vpack.c.b16 %v673, %v667
        %v788 = vpack.c.b16 %v680, %v674
        %v789 = vpack.c.b16 %v681, %v675
        %v790 = vpack.c.b16 %v682, %v676
        %v791 = vpack.c.b16 %v683, %v677
        %v792 = vpack.c.b16 %v684, %v678
        %v793 = vpack.c.b16 %v685, %v679
        %v794 = vpack.c.b16 %v692, %v686
        %v795 = vpack.c.b16 %v693, %v687
        %v796 = vpack.c.b16 %v694, %v688
        %v797 = vpack.c.b16 %v695, %v689
        %v798 = vpack.c.b16 %v696, %v690
        %v799 = vpack.c.b16 %v697, %v691
        %v800 = vpack.c.b16 %v704, %v698
        %v801 = vpack.c.b16 %v705, %v699
        %v802 = vpack.c.b16 %v706, %v700
        %v803 = vpack.c.b16 %v707, %v701
        %v804 = vpack.c.b16 %v708, %v702
        %v805 = vpack.c.b16 %v709, %v703
        %902 = vmatprep.subr.bf16.mxu0 %v711
        %903 = vmatpush1.bf16.msra.mxu0 %v710
        %904 = vmatprep.subr.bf16.mxu0 %v717
        %905 = vmatpush1.bf16.msra.mxu0 %v716
        %906 = vmatprep.subr.bf16.mxu0 %v723
        %907 = vmatpush1.bf16.msra.mxu0 %v722
        %908 = vmatprep.subr.bf16.mxu0 %v729
        %909 = vmatpush1.bf16.msra.mxu0 %v728
        %910 = vmatprep.subr.bf16.mxu0 %v735
        %911 = vmatpush1.bf16.msra.mxu0 %v734
        %912 = vmatprep.subr.bf16.mxu0 %v741
        %913 = vmatpush1.bf16.msra.mxu0 %v740
        %914 = vmatprep.subr.bf16.mxu0 %v747
        %915 = vmatpush1.bf16.msra.mxu0 %v746
        %916 = vmatprep.subr.bf16.mxu0 %v753
        %917 = vmatpush1.bf16.msra.mxu0 %v752
        %918 = vmatprep.subr.bf16.mxu0 %v759
        %919 = vmatpush1.bf16.msra.mxu0 %v758
        %920 = vmatprep.subr.bf16.mxu0 %v765
        %921 = vmatpush1.bf16.msra.mxu0 %v764
        %922 = vmatprep.subr.bf16.mxu0 %v771
        %923 = vmatpush1.bf16.msra.mxu0 %v770
        %924 = vmatprep.subr.bf16.mxu0 %v777
        %925 = vmatpush1.bf16.msra.mxu0 %v776
        %926 = vmatprep.subr.bf16.mxu0 %v783
        %927 = vmatpush1.bf16.msra.mxu0 %v782
        %928 = vmatprep.subr.bf16.mxu0 %v789
        %929 = vmatpush1.bf16.msra.mxu0 %v788
        %930 = vmatprep.subr.bf16.mxu0 %v795
        %931 = vmatpush1.bf16.msra.mxu0 %v794
        %932 = vmatprep.subr.bf16.mxu0 %v801
        %933 = vmatpush1.bf16.msra.mxu0 %v800
        %934 = vmatprep.mubr.bf16.mxu0 %v293
        %935 = vmatmul.mubr.bf16.gmra.mrb[0].mxu0 %v292
        %v936 = vpop.f32.mrb[0].mxu0
        %v937 = vadd.f32 %v395, %v936
        %v938 = vpop.f32.mrb[0].mxu0
        %v939 = vadd.f32 %v399, %v938
        %v940 = vpop.f32.mrb[0].mxu0
        %v941 = vadd.f32 %v395, %v940
        %v942 = vpop.f32.mrb[0].mxu0
        %v943 = vadd.f32 %v399, %v942
        %944 = vdwg.mxu0
        %945 = vmatprep.subr.bf16.mxu0 %v713
        %946 = vmatpush1.bf16.msra.mxu0 %v712
        %947 = vmatprep.subr.bf16.mxu0 %v719
        %948 = vmatpush1.bf16.msra.mxu0 %v718
        %949 = vmatprep.subr.bf16.mxu0 %v725
        %950 = vmatpush1.bf16.msra.mxu0 %v724
        %951 = vmatprep.subr.bf16.mxu0 %v731
        %952 = vmatpush1.bf16.msra.mxu0 %v730
        %953 = vmatprep.subr.bf16.mxu0 %v737
        %954 = vmatpush1.bf16.msra.mxu0 %v736
        %955 = vmatprep.subr.bf16.mxu0 %v743
        %956 = vmatpush1.bf16.msra.mxu0 %v742
        %957 = vmatprep.subr.bf16.mxu0 %v749
        %958 = vmatpush1.bf16.msra.mxu0 %v748
        %959 = vmatprep.subr.bf16.mxu0 %v755
        %960 = vmatpush1.bf16.msra.mxu0 %v754
        %961 = vmatprep.subr.bf16.mxu0 %v761
        %962 = vmatpush1.bf16.msra.mxu0 %v760
        %963 = vmatprep.subr.bf16.mxu0 %v767
        %964 = vmatpush1.bf16.msra.mxu0 %v766
        %965 = vmatprep.subr.bf16.mxu0 %v773
        %966 = vmatpush1.bf16.msra.mxu0 %v772
        %967 = vmatprep.subr.bf16.mxu0 %v779
        %968 = vmatpush1.bf16.msra.mxu0 %v778
        %969 = vmatprep.subr.bf16.mxu0 %v785
        %970 = vmatpush1.bf16.msra.mxu0 %v784
        %971 = vmatprep.subr.bf16.mxu0 %v791
        %972 = vmatpush1.bf16.msra.mxu0 %v790
        %973 = vmatprep.subr.bf16.mxu0 %v797
        %974 = vmatpush1.bf16.msra.mxu0 %v796
        %975 = vmatprep.subr.bf16.mxu0 %v803
        %976 = vmatpush1.bf16.msra.mxu0 %v802
        %977 = vmatprep.mubr.bf16.mxu0 %v293
        %978 = vmatmul.mubr.bf16.gmra.mrb[0].mxu0 %v292
        %v979 = vpop.f32.mrb[0].mxu0
        %v980 = vadd.f32 %v403, %v979
        %v981 = vpop.f32.mrb[0].mxu0
        %v982 = vadd.f32 %v407, %v981
        %v983 = vpop.f32.mrb[0].mxu0
        %v984 = vadd.f32 %v403, %v983
        %v985 = vpop.f32.mrb[0].mxu0
        %v986 = vadd.f32 %v407, %v985
        %987 = vdwg.mxu0
        %988 = vmatprep.subr.bf16.mxu0 %v715
        %989 = vmatpush1.bf16.msra.mxu0 %v714
        %990 = vmatprep.subr.bf16.mxu0 %v721
        %991 = vmatpush1.bf16.msra.mxu0 %v720
        %992 = vmatprep.subr.bf16.mxu0 %v727
        %993 = vmatpush1.bf16.msra.mxu0 %v726
        %994 = vmatprep.subr.bf16.mxu0 %v733
        %995 = vmatpush1.bf16.msra.mxu0 %v732
        %996 = vmatprep.subr.bf16.mxu0 %v739
        %997 = vmatpush1.bf16.msra.mxu0 %v738
        %998 = vmatprep.subr.bf16.mxu0 %v745
        %999 = vmatpush1.bf16.msra.mxu0 %v744
        %1000 = vmatprep.subr.bf16.mxu0 %v751
        %1001 = vmatpush1.bf16.msra.mxu0 %v750
        %1002 = vmatprep.subr.bf16.mxu0 %v757
        %1003 = vmatpush1.bf16.msra.mxu0 %v756
        %1004 = vmatprep.subr.bf16.mxu0 %v763
        %1005 = vmatpush1.bf16.msra.mxu0 %v762
        %1006 = vmatprep.subr.bf16.mxu0 %v769
        %1007 = vmatpush1.bf16.msra.mxu0 %v768
        %1008 = vmatprep.subr.bf16.mxu0 %v775
        %1009 = vmatpush1.bf16.msra.mxu0 %v774
        %1010 = vmatprep.subr.bf16.mxu0 %v781
        %1011 = vmatpush1.bf16.msra.mxu0 %v780
        %1012 = vmatprep.subr.bf16.mxu0 %v787
        %1013 = vmatpush1.bf16.msra.mxu0 %v786
        %1014 = vmatprep.subr.bf16.mxu0 %v793
        %1015 = vmatpush1.bf16.msra.mxu0 %v792
        %1016 = vmatprep.subr.bf16.mxu0 %v799
        %1017 = vmatpush1.bf16.msra.mxu0 %v798
        %1018 = vmatprep.subr.bf16.mxu0 %v805
        %1019 = vmatpush1.bf16.msra.mxu0 %v804
        %1020 = vmatprep.mubr.bf16.mxu0 %v293
        %1021 = vmatmul.mubr.bf16.gmra.mrb[0].mxu0 %v292
        %v1022 = vpop.f32.mrb[0].mxu0
        %v1023 = vadd.f32 %v411, %v1022
        %v1024 = vpop.f32.mrb[0].mxu0
        %v1025 = vadd.f32 %v415, %v1024
        %v1026 = vpop.f32.mrb[0].mxu0
        %v1027 = vadd.f32 %v411, %v1026
        %v1028 = vpop.f32.mrb[0].mxu0
        %v1029 = vadd.f32 %v415, %v1028
        %1030 = vdwg.mxu0
        %v1031 = vld [vmem:[#allocation7] sm:$0xff]
        %v1032 = vld [vmem:[#allocation7 + $0x8] sm:$0xff]
        %v1033 = vld [vmem:[#allocation8] sm:$0xff]
        %v1034 = vld [vmem:[#allocation8 + $0x8] sm:$0xff]
        %v1035 = vmul.f32 %v937, %v1031
        %v1036 = vmul.f32 %v941, %v1032
        %1039 = vrot.lane.b32.xlu0 %v1033, 64
        %v1040 = vpop.permute.xlu0 %1039
        %1041 = vrot.lane.b32.xlu0 %v1034, 64
        %v1042 = vpop.permute.xlu0 %1041
        %v1045 = vmul.f32 %v937, %v1040
        %v1046 = vmul.f32 %v941, %v1042
        %1049 = vrot.lane.b32.xlu0 %v1045, 64
        %v1050 = vpop.permute.xlu0 %1049
        %1051 = vrot.lane.b32.xlu0 %v1046, 64
        %v1052 = vpop.permute.xlu0 %1051
        %v1055 = vsub.f32 %v1035, %v1050
        %v1056 = vsub.f32 %v1036, %v1052
        %v1057 = vmul.f32 %v937, %v1033
        %v1058 = vmul.f32 %v941, %v1034
        %1061 = vrot.lane.b32.xlu0 %v1031, 64
        %v1062 = vpop.permute.xlu0 %1061
        %1063 = vrot.lane.b32.xlu0 %v1032, 64
        %v1064 = vpop.permute.xlu0 %1063
        %v1067 = vmul.f32 %v937, %v1062
        %v1068 = vmul.f32 %v941, %v1064
        %1071 = vrot.lane.b32.xlu0 %v1067, 64
        %v1072 = vpop.permute.xlu0 %1071
        %1073 = vrot.lane.b32.xlu0 %v1068, 64
        %v1074 = vpop.permute.xlu0 %1073
        %v1077 = vadd.f32 %v1057, %v1072
        %v1078 = vadd.f32 %v1058, %v1074
        %1081 = vrot.lane.b32.xlu0 %v1077, 64
        %v1082 = vpop.permute.xlu0 %1081
        %1083 = vrot.lane.b32.xlu0 %v1078, 64
        %v1084 = vpop.permute.xlu0 %1083
        %vm1087 = vcmask 523264
        %v1088 = vsel %vm1087, %v1055, %v1082
        %v1089 = vsel %vm1087, %v1056, %v1084
        %v1090 = vpack.c.bf16 %v1089, %v1088
        %v1091 = vmul.f32 %v980, %v1031
        %v1092 = vmul.f32 %v984, %v1032
        %v1093 = vmul.f32 %v980, %v1040
        %v1094 = vmul.f32 %v984, %v1042
        %1097 = vrot.lane.b32.xlu0 %v1093, 64
        %v1098 = vpop.permute.xlu0 %1097
        %1099 = vrot.lane.b32.xlu0 %v1094, 64
        %v1100 = vpop.permute.xlu0 %1099
        %v1103 = vsub.f32 %v1091, %v1098
        %v1104 = vsub.f32 %v1092, %v1100
        %v1105 = vmul.f32 %v980, %v1033
        %v1106 = vmul.f32 %v984, %v1034
        %v1107 = vmul.f32 %v980, %v1062
        %v1108 = vmul.f32 %v984, %v1064
        %1111 = vrot.lane.b32.xlu0 %v1107, 64
        %v1112 = vpop.permute.xlu0 %1111
        %1113 = vrot.lane.b32.xlu0 %v1108, 64
        %v1114 = vpop.permute.xlu0 %1113
        %v1117 = vadd.f32 %v1105, %v1112
        %v1118 = vadd.f32 %v1106, %v1114
        %1121 = vrot.lane.b32.xlu0 %v1117, 64
        %v1122 = vpop.permute.xlu0 %1121
        %1123 = vrot.lane.b32.xlu0 %v1118, 64
        %v1124 = vpop.permute.xlu0 %1123
        %v1127 = vsel %vm1087, %v1103, %v1122
        %v1128 = vsel %vm1087, %v1104, %v1124
        %v1129 = vpack.c.bf16 %v1128, %v1127
        %1130 = vmatprep.subr.bf16.mxu0 0
        %1131 = vmatpush1.bf16.xpose.msra.mxu0 %v1129
        %1132 = vmatprep.subr.bf16.mxu0 0
        %1133 = vmatpush1.bf16.xpose.msra.mxu0 0
        %1134 = vmatprep.subr.bf16.mxu0 0
        %1135 = vmatpush1.bf16.xpose.msra.mxu0 0
        %1136 = vmatprep.subr.bf16.mxu0 0
        %1137 = vmatpush1.bf16.xpose.msra.mxu0 0
        %1138 = vmatprep.subr.bf16.mxu0 0
        %1139 = vmatpush1.bf16.xpose.msra.mxu0 0
        %1140 = vmatprep.subr.bf16.mxu0 0
        %1141 = vmatpush1.bf16.xpose.msra.mxu0 0
        %1142 = vmatprep.subr.bf16.mxu0 0
        %1143 = vmatpush1.bf16.xpose.msra.mxu0 0
        %1144 = vmatprep.subr.bf16.mxu0 0
        %1145 = vmatpush1.bf16.xpose.msra.mxu0 0
        %1146 = vmatprep.subr.bf16.mxu0 0
        %1147 = vmatpush1.bf16.xpose.msra.mxu0 0
        %1148 = vmatprep.subr.bf16.mxu0 0
        %1149 = vmatpush1.bf16.xpose.msra.mxu0 0
        %1150 = vmatprep.subr.bf16.mxu0 0
        %1151 = vmatpush1.bf16.xpose.msra.mxu0 0
        %1152 = vmatprep.subr.bf16.mxu0 0
        %1153 = vmatpush1.bf16.xpose.msra.mxu0 0
        %1154 = vmatprep.subr.bf16.mxu0 0
        %1155 = vmatpush1.bf16.xpose.msra.mxu0 0
        %1156 = vmatprep.subr.bf16.mxu0 0
        %1157 = vmatpush1.bf16.xpose.msra.mxu0 0
        %1158 = vmatprep.subr.bf16.mxu0 0
        %1159 = vmatpush1.bf16.xpose.msra.mxu0 0
        %1160 = vmatprep.subr.bf16.mxu0 0
        %1161 = vmatpush1.bf16.xpose.msra.mxu0 0
        %1162 = vmatprep.mubr.bf16.mxu0 0
        %1163 = vmatmul.mubr.bf16.gmra.mrb[0].mxu0 %v1090
        %v1164 = vpop.f32.mrb[0].mxu0
        %v1165 = vadd.f32 0.0, %v1164
        %v1166 = vpop.f32.mrb[0].mxu0
        %v1167 = vpop.f32.mrb[0].mxu0
        %v1168 = vadd.f32 0.0, %v1167
        %v1169 = vpop.f32.mrb[0].mxu0
        %1170 = vdwg.mxu0
        %v1171 = vmul.f32 %v1165, 0.088388346
        %v1172 = vmul.f32 %v1168, 0.088388346
        %vm1173 = vcmask 130048
        %v1174 = vsel %vm1173, %v1171, -inf
        %1175 = vmax.xlane.f32.xlu0 %v1174
        %v1176 = vpop.xlane.xlu0 %1175
        %v1177 = vsel %vm1173, %v1172, -inf
        %1178 = vmax.xlane.f32.xlu0 %v1177
        %v1179 = vpop.xlane.xlu0 %1178
        %v1180 = vsub.f32 %v1171, %v1176
        %v1181 = vsub.f32 %v1172, %v1179
        %v1182 = vmul.f32 %v1180, 1.442695
        %v1183 = vpow.pop %v1182
        %v1184 = vmul.f32 %v1181, 1.442695
        %v1185 = vpow.pop %v1184
        %v1186 = vsel %vm1173, %v1183, 0.0
        %1187 = vadd.xlane.f32.xlu0 %v1186
        %v1188 = vpop.xlane.xlu0 %1187
        %v1189 = vsel %vm1173, %v1185, 0.0
        %1190 = vadd.xlane.f32.xlu0 %v1189
        %v1191 = vpop.xlane.xlu0 %1190
        %v1192 = vpack.c.bf16 %v1185, %v1183
        %v1193 = vpack.c.bf16 %v1027, %v1023
        %v1195 = vsel %vm1173, %v1192, 0
        %1197 = vmatprep.subr.bf16.mxu0 0
        %1198 = vmatpush1.bf16.msra.mxu0 %v1193
        %1199 = vmatprep.subr.bf16.mxu0 0
        %1200 = vmatpush1.bf16.msra.mxu0 0
        %1201 = vmatprep.subr.bf16.mxu0 0
        %1202 = vmatpush1.bf16.msra.mxu0 0
        %1203 = vmatprep.subr.bf16.mxu0 0
        %1204 = vmatpush1.bf16.msra.mxu0 0
        %1205 = vmatprep.subr.bf16.mxu0 0
        %1206 = vmatpush1.bf16.msra.mxu0 0
        %1207 = vmatprep.subr.bf16.mxu0 0
        %1208 = vmatpush1.bf16.msra.mxu0 0
        %1209 = vmatprep.subr.bf16.mxu0 0
        %1210 = vmatpush1.bf16.msra.mxu0 0
        %1211 = vmatprep.subr.bf16.mxu0 0
        %1212 = vmatpush1.bf16.msra.mxu0 0
        %1213 = vmatprep.subr.bf16.mxu0 0
        %1214 = vmatpush1.bf16.msra.mxu0 0
        %1215 = vmatprep.subr.bf16.mxu0 0
        %1216 = vmatpush1.bf16.msra.mxu0 0
        %1217 = vmatprep.subr.bf16.mxu0 0
        %1218 = vmatpush1.bf16.msra.mxu0 0
        %1219 = vmatprep.subr.bf16.mxu0 0
        %1220 = vmatpush1.bf16.msra.mxu0 0
        %1221 = vmatprep.subr.bf16.mxu0 0
        %1222 = vmatpush1.bf16.msra.mxu0 0
        %1223 = vmatprep.subr.bf16.mxu0 0
        %1224 = vmatpush1.bf16.msra.mxu0 0
        %1225 = vmatprep.subr.bf16.mxu0 0
        %1226 = vmatpush1.bf16.msra.mxu0 0
        %1227 = vmatprep.subr.bf16.mxu0 0
        %1228 = vmatpush1.bf16.msra.mxu0 0
        %1229 = vmatprep.mubr.bf16.mxu0 0
        %1230 = vmatmul.mubr.bf16.gmra.mrb[0].mxu0 %v1195
        %v1231 = vpop.f32.mrb[0].mxu0
        %v1232 = vadd.f32 0.0, %v1231
        %v1233 = vpop.f32.mrb[0].mxu0
        %v1234 = vpop.f32.mrb[0].mxu0
        %v1235 = vadd.f32 0.0, %v1234
        %v1236 = vpop.f32.mrb[0].mxu0
        %1237 = vdwg.mxu0
        %v1238 = vrcp.pop %v1188
        %v1239 = vmul.f32 %v1232, %v1238
        %v1240 = vrcp.pop %v1191
        %v1241 = vmul.f32 %v1235, %v1240
        %v1242 = vmul.f32 %v939, %v1031
        %v1243 = vmul.f32 %v943, %v1032
        %v1244 = vmul.f32 %v939, %v1040
        %v1245 = vmul.f32 %v943, %v1042
        %1248 = vrot.lane.b32.xlu0 %v1244, 64
        %v1249 = vpop.permute.xlu0 %1248
        %1250 = vrot.lane.b32.xlu0 %v1245, 64
        %v1251 = vpop.permute.xlu0 %1250
        %v1254 = vsub.f32 %v1242, %v1249
        %v1255 = vsub.f32 %v1243, %v1251
        %v1256 = vmul.f32 %v939, %v1033
        %v1257 = vmul.f32 %v943, %v1034
        %v1258 = vmul.f32 %v939, %v1062
        %v1259 = vmul.f32 %v943, %v1064
        %1262 = vrot.lane.b32.xlu0 %v1258, 64
        %v1263 = vpop.permute.xlu0 %1262
        %1264 = vrot.lane.b32.xlu0 %v1259, 64
        %v1265 = vpop.permute.xlu0 %1264
        %v1268 = vadd.f32 %v1256, %v1263
        %v1269 = vadd.f32 %v1257, %v1265
        %1272 = vrot.lane.b32.xlu0 %v1268, 64
        %v1273 = vpop.permute.xlu0 %1272
        %1274 = vrot.lane.b32.xlu0 %v1269, 64
        %v1275 = vpop.permute.xlu0 %1274
        %v1278 = vsel %vm1087, %v1254, %v1273
        %v1279 = vsel %vm1087, %v1255, %v1275
        %v1280 = vpack.c.bf16 %v1279, %v1278
        %v1281 = vmul.f32 %v982, %v1031
        %v1282 = vmul.f32 %v986, %v1032
        %v1283 = vmul.f32 %v982, %v1040
        %v1284 = vmul.f32 %v986, %v1042
        %1287 = vrot.lane.b32.xlu0 %v1283, 64
        %v1288 = vpop.permute.xlu0 %1287
        %1289 = vrot.lane.b32.xlu0 %v1284, 64
        %v1290 = vpop.permute.xlu0 %1289
        %v1293 = vsub.f32 %v1281, %v1288
        %v1294 = vsub.f32 %v1282, %v1290
        %v1295 = vmul.f32 %v982, %v1033
        %v1296 = vmul.f32 %v986, %v1034
        %v1297 = vmul.f32 %v982, %v1062
        %v1298 = vmul.f32 %v986, %v1064
        %1301 = vrot.lane.b32.xlu0 %v1297, 64
        %v1302 = vpop.permute.xlu0 %1301
        %1303 = vrot.lane.b32.xlu0 %v1298, 64
        %v1304 = vpop.permute.xlu0 %1303
        %v1307 = vadd.f32 %v1295, %v1302
        %v1308 = vadd.f32 %v1296, %v1304
        %1311 = vrot.lane.b32.xlu0 %v1307, 64
        %v1312 = vpop.permute.xlu0 %1311
        %1313 = vrot.lane.b32.xlu0 %v1308, 64
        %v1314 = vpop.permute.xlu0 %1313
        %v1317 = vsel %vm1087, %v1293, %v1312
        %v1318 = vsel %vm1087, %v1294, %v1314
        %v1319 = vpack.c.bf16 %v1318, %v1317
        %1320 = vmatprep.subr.bf16.mxu0 0
        %1321 = vmatpush1.bf16.xpose.msra.mxu0 %v1319
        %1322 = vmatprep.subr.bf16.mxu0 0
        %1323 = vmatpush1.bf16.xpose.msra.mxu0 0
        %1324 = vmatprep.subr.bf16.mxu0 0
        %1325 = vmatpush1.bf16.xpose.msra.mxu0 0
        %1326 = vmatprep.subr.bf16.mxu0 0
        %1327 = vmatpush1.bf16.xpose.msra.mxu0 0
        %1328 = vmatprep.subr.bf16.mxu0 0
        %1329 = vmatpush1.bf16.xpose.msra.mxu0 0
        %1330 = vmatprep.subr.bf16.mxu0 0
        %1331 = vmatpush1.bf16.xpose.msra.mxu0 0
        %1332 = vmatprep.subr.bf16.mxu0 0
        %1333 = vmatpush1.bf16.xpose.msra.mxu0 0
        %1334 = vmatprep.subr.bf16.mxu0 0
        %1335 = vmatpush1.bf16.xpose.msra.mxu0 0
        %1336 = vmatprep.subr.bf16.mxu0 0
        %1337 = vmatpush1.bf16.xpose.msra.mxu0 0
        %1338 = vmatprep.subr.bf16.mxu0 0
        %1339 = vmatpush1.bf16.xpose.msra.mxu0 0
        %1340 = vmatprep.subr.bf16.mxu0 0
        %1341 = vmatpush1.bf16.xpose.msra.mxu0 0
        %1342 = vmatprep.subr.bf16.mxu0 0
        %1343 = vmatpush1.bf16.xpose.msra.mxu0 0
        %1344 = vmatprep.subr.bf16.mxu0 0
        %1345 = vmatpush1.bf16.xpose.msra.mxu0 0
        %1346 = vmatprep.subr.bf16.mxu0 0
        %1347 = vmatpush1.bf16.xpose.msra.mxu0 0
        %1348 = vmatprep.subr.bf16.mxu0 0
        %1349 = vmatpush1.bf16.xpose.msra.mxu0 0
        %1350 = vmatprep.subr.bf16.mxu0 0
        %1351 = vmatpush1.bf16.xpose.msra.mxu0 0
        %1352 = vmatprep.mubr.bf16.mxu0 0
        %1353 = vmatmul.mubr.bf16.gmra.mrb[0].mxu0 %v1280
        %v1354 = vpop.f32.mrb[0].mxu0
        %v1355 = vadd.f32 0.0, %v1354
        %v1356 = vpop.f32.mrb[0].mxu0
        %v1357 = vpop.f32.mrb[0].mxu0
        %v1358 = vadd.f32 0.0, %v1357
        %v1359 = vpop.f32.mrb[0].mxu0
        %1360 = vdwg.mxu0
        %v1361 = vmul.f32 %v1355, 0.088388346
        %v1362 = vmul.f32 %v1358, 0.088388346
        %v1363 = vsel %vm1173, %v1361, -inf
        %1364 = vmax.xlane.f32.xlu0 %v1363
        %v1365 = vpop.xlane.xlu0 %1364
        %v1366 = vsel %vm1173, %v1362, -inf
        %1367 = vmax.xlane.f32.xlu0 %v1366
        %v1368 = vpop.xlane.xlu0 %1367
        %v1369 = vsub.f32 %v1361, %v1365
        %v1370 = vsub.f32 %v1362, %v1368
        %v1371 = vmul.f32 %v1369, 1.442695
        %v1372 = vpow.pop %v1371
        %v1373 = vmul.f32 %v1370, 1.442695
        %v1374 = vpow.pop %v1373
        %v1375 = vsel %vm1173, %v1372, 0.0
        %1376 = vadd.xlane.f32.xlu0 %v1375
        %v1377 = vpop.xlane.xlu0 %1376
        %v1378 = vsel %vm1173, %v1374, 0.0
        %1379 = vadd.xlane.f32.xlu0 %v1378
        %v1380 = vpop.xlane.xlu0 %1379
        %v1381 = vpack.c.bf16 %v1374, %v1372
        %v1382 = vpack.c.bf16 %v1029, %v1025
        %v1384 = vsel %vm1173, %v1381, 0
        %1386 = vmatprep.subr.bf16.mxu0 0
        %1387 = vmatpush1.bf16.msra.mxu0 %v1382
        %1388 = vmatprep.subr.bf16.mxu0 0
        %1389 = vmatpush1.bf16.msra.mxu0 0
        %1390 = vmatprep.subr.bf16.mxu0 0
        %1391 = vmatpush1.bf16.msra.mxu0 0
        %1392 = vmatprep.subr.bf16.mxu0 0
        %1393 = vmatpush1.bf16.msra.mxu0 0
        %1394 = vmatprep.subr.bf16.mxu0 0
        %1395 = vmatpush1.bf16.msra.mxu0 0
        %1396 = vmatprep.subr.bf16.mxu0 0
        %1397 = vmatpush1.bf16.msra.mxu0 0
        %1398 = vmatprep.subr.bf16.mxu0 0
        %1399 = vmatpush1.bf16.msra.mxu0 0
        %1400 = vmatprep.subr.bf16.mxu0 0
        %1401 = vmatpush1.bf16.msra.mxu0 0
        %1402 = vmatprep.subr.bf16.mxu0 0
        %1403 = vmatpush1.bf16.msra.mxu0 0
        %1404 = vmatprep.subr.bf16.mxu0 0
        %1405 = vmatpush1.bf16.msra.mxu0 0
        %1406 = vmatprep.subr.bf16.mxu0 0
        %1407 = vmatpush1.bf16.msra.mxu0 0
        %1408 = vmatprep.subr.bf16.mxu0 0
        %1409 = vmatpush1.bf16.msra.mxu0 0
        %1410 = vmatprep.subr.bf16.mxu0 0
        %1411 = vmatpush1.bf16.msra.mxu0 0
        %1412 = vmatprep.subr.bf16.mxu0 0
        %1413 = vmatpush1.bf16.msra.mxu0 0
        %1414 = vmatprep.subr.bf16.mxu0 0
        %1415 = vmatpush1.bf16.msra.mxu0 0
        %1416 = vmatprep.subr.bf16.mxu0 0
        %1417 = vmatpush1.bf16.msra.mxu0 0
        %1418 = vmatprep.mubr.bf16.mxu0 0
        %1419 = vmatmul.mubr.bf16.gmra.mrb[0].mxu0 %v1384
        %v1420 = vpop.f32.mrb[0].mxu0
        %v1421 = vadd.f32 0.0, %v1420
        %v1422 = vpop.f32.mrb[0].mxu0
        %v1423 = vpop.f32.mrb[0].mxu0
        %v1424 = vadd.f32 0.0, %v1423
        %v1425 = vpop.f32.mrb[0].mxu0
        %1426 = vdwg.mxu0
        %v1427 = vrcp.pop %v1377
        %v1428 = vmul.f32 %v1421, %v1427
        %v1429 = vrcp.pop %v1380
        %v1430 = vmul.f32 %v1424, %v1429
        %1431 = vst [vmem:[%s286] sm:$0xff] %v1239
        %1432 = vst [vmem:[%s286 + $0x8] sm:$0xff] %v1428
        %1433 = vst [vmem:[%s286 + $0x10] sm:$0xff] %v1241
        %1434 = vst [vmem:[%s286 + $0x18] sm:$0xff] %v1430
        %s1435 = sand.u32 %s142, 1
        %s1436 = scalar_lea.sflag [#allocation4], %s1435
        %s1437 = sand.u32 %s142, 1
        %s1438 = smul.addr %s1437, 32
        %s1439 = scalar_lea.vmem [#allocation10], %s1438
        // Predicated region
        $region57: #{tpu_custom_call.1} parent=39 // pred_check
          %p1440 = pneg %p152
        $region58: #{tpu_custom_call.1} parent=39 // pred_check_branch
          %1442 = sbr.rel (%p1440) target = $region60
        $region59: #{tpu_custom_call.1} parent=39 // pred_region
          %s1444 = ssub.s32 512, 512
          %1445 = vsyncadd %s1436, %s1444
          %s1446 = smul.addr %s24, 4
          %s1447 = smul.addr %s1446, 128
          %s1448 = scalar_lea.hbm %s5, %s1447
          %s1449 = sshll.u32 %s1439, 4
          %s1450 = int_to_ptr.vmem [resolvable:$true] %s1449
          %1455 = dma.vmem_to_hbm [thread:$0]  %s1450, 512, %s1448, %s1436, 256, 256, 16
        $region60: #{tpu_custom_call.1} parent=39 // pred_fallthru
          _
      $region40: #{tpu_custom_call.1} parent=5 // pred_fallthru
        _
      %p1456 = scmp.le.s32.totalorder 2, %s19
      // Predicated region
      $region61: #{tpu_custom_call.1} parent=5 // pred_check
        %p1457 = pneg %p1456
      $region62: #{tpu_custom_call.1} parent=5 // pred_check_branch
        %1459 = sbr.rel (%p1457) target = $region64
      $region63: #{tpu_custom_call.1} parent=5 // pred_region
        %s1460 = ssub.s32 %s19, 2
        // Predicated region
        $region65: #{tpu_custom_call.1} parent=63 // pred_check
          %p1461 = pneg %p158
        $region66: #{tpu_custom_call.1} parent=63 // pred_check_branch
          %1463 = sbr.rel (%p1461) target = $region68
        $region67: #{tpu_custom_call.1} parent=63 // pred_region
          %s1464 = sand.u32 %s143, 1
          %s1465 = scalar_lea.sflag [#allocation4], %s1464
          %s1466 = sand.u32 %s143, 1
          %s1467 = smul.addr %s1466, 32
          %s1468 = scalar_lea.vmem [#allocation10], %s1467
          %1469 = dma.done %s1465, 512
        $region68: #{tpu_custom_call.1} parent=63 // pred_fallthru
          _
      $region64: #{tpu_custom_call.1} parent=5 // pred_fallthru
        _
    $region6: #{tpu_custom_call.1} parent=1 // loop_footer
      %s23 = sadd.s32 1, %s19
    $region7: #{tpu_custom_call.1} parent=1 // loop_footer_branch
      %18 = sbr.rel target = $region3
    $region8: #{tpu_custom_call.1} parent=1 // loop_exit
      _
    %1470 = vsyncpa [#allocation3], 1
    %s1471 = scalar_lea.sflag [#allocation3], 1
    %1472 = vsyncpa %s1471, 1
    %1473 = vsyncpa [#allocation6], 1
    %1474 = vsyncpa [#allocation9], 1
    %1475 = vsyncpa [#allocation4], 1
    %s1476 = scalar_lea.sflag [#allocation4], 1
    %1477 = vsyncpa %s1476, 1

</llo_original>
